<compile_context>
chip_gen: v6e
topology: v6e:2x2x1
jax: 0.10.0
libtpu: 0.0.40
codegen_flags: <defaults>
</compile_context>

<pallas_src>
import functools

import numpy as np
import jax
import jax.numpy as jnp
from jax.experimental import pallas as pl
from jax.experimental.pallas import tpu as pltpu

_EPS = 1e-5


def _global_block_kernel(x_ref, w1_ref, w2_ref, vec_ref, mask_ref, wg_ref, bg_ref,
                         filt_ref, dftf_ref, dfti_ref, o_ref, *, K, F):
    x = x_ref[...]                                   # (B*C, T), rows are (batch, channel)

    b1 = vec_ref[:, 0:1]
    s1 = vec_ref[:, 1:2]
    t1 = vec_ref[:, 2:3]
    b2 = vec_ref[:, 3:4]                             # proj2 bias with BN2 shift folded in
    s3 = vec_ref[:, 4:5]
    t3 = vec_ref[:, 5:6]

    # proj1 (block-diagonal 1x1 conv) + ReLU + BN1 (inference scale/shift)
    h = jnp.dot(w1_ref[...], x, preferred_element_type=jnp.float32) + b1
    h = jnp.maximum(h, 0.0)
    h = h * s1 + t1

    # ---- SparseDGF gate: per-batch GAP -> linear -> softmax, in row-expanded form ----
    # logits_exp[(b,c), k] = sum_{c'} wg[k,c'] * pooled[(b,c')]  via one masked matmul,
    # so every row of batch b carries that batch's gate (no reshapes / transposes needed).
    pooled = jnp.mean(h, axis=1, keepdims=True)                                  # (B*C, 1)
    logits = jnp.dot(mask_ref[...], pooled * wg_ref[...],
                     preferred_element_type=jnp.float32) + bg_ref[...]           # (B*C, K)
    m = jnp.max(logits, axis=-1, keepdims=True)
    e = jnp.exp(logits - m)
    gate = e * pl.reciprocal(jnp.sum(e, axis=-1, keepdims=True), approx=True)    # (B*C, K)

    # Mix the K packed (real|imag) filter banks with the per-row gate columns.
    # (Lane-broadcast column multiplies; no scalar extracts, no scalar broadcast_in_dim.)
    wmix = gate[:, 0:1] * filt_ref[0]
    for k in range(1, K):
        wmix = wmix + gate[:, k:k + 1] * filt_ref[k]                             # (B*C, 2F)

    # rfft(h, norm='ortho') as ONE fused matmul, complex multiply on the packed layout,
    # irfft(Y, n=T, norm='ortho') as ONE fused matmul.
    xf = jnp.dot(h, dftf_ref[...], preferred_element_type=jnp.float32)           # (B*C, 2F)
    xr, xi = xf[:, :F], xf[:, F:]
    wr, wi = wmix[:, :F], wmix[:, F:]
    yf = jnp.concatenate([xr * wr - xi * wi, xr * wi + xi * wr], axis=-1)        # (B*C, 2F)
    g = jnp.dot(yf, dfti_ref[...], preferred_element_type=jnp.float32)           # (B*C, T)
    # TODO(synk): SparseDGF's dropout on the dynamic filter is inference-mode identity here.

    # ReLU (BN2 is folded into proj2 on the host), proj2 + ReLU + BN3, residual
    g = jnp.maximum(g, 0.0)
    g = jnp.dot(w2_ref[...], g, preferred_element_type=jnp.float32) + b2
    g = jnp.maximum(g, 0.0)
    o_ref[...] = x + g * s3 + t3


def _make_dft_mats(T):
    F = T // 2 + 1
    t = np.arange(T)[:, None].astype(np.float64)
    f = np.arange(F)[None, :].astype(np.float64)
    ang = 2.0 * np.pi * t * f / T                   # (T, F)
    scale = 1.0 / np.sqrt(T)
    ccos = np.cos(ang) * scale                      # forward rfft real basis   (T, F)
    csin = -np.sin(ang) * scale                     # forward rfft imag basis   (T, F)
    coef = np.full((F,), 2.0)
    coef[0] = 1.0
    if T % 2 == 0:
        coef[-1] = 1.0
    icr = (coef[:, None] * np.cos(ang.T)) * scale   # inverse basis (real part) (F, T)
    ici = (-coef[:, None] * np.sin(ang.T)) * scale  # inverse basis (imag part) (F, T)
    dft_fwd = np.concatenate([ccos, csin], axis=1)  # (T, 2F)   [real | imag]
    dft_inv = np.concatenate([icr, ici], axis=0)    # (2F, T)   [real ; imag]
    return jnp.asarray(dft_fwd, jnp.float32), jnp.asarray(dft_inv, jnp.float32)


def _bn_fold(gamma, beta, mean, var):
    s = gamma / jnp.sqrt(var + _EPS)
    t = beta - mean * s
    return s.astype(jnp.float32), t.astype(jnp.float32)


def global_block_forward(x, params):
    B, C, T = x.shape
    K = params["wg"].shape[0]
    F = T // 2 + 1
    BC = B * C

    dft_fwd, dft_inv = _make_dft_mats(T)

    s1, t1 = _bn_fold(params["g1"], params["be1"], params["rm1"], params["rv1"])
    s2, t2 = _bn_fold(params["g2"], params["be2"], params["rm2"], params["rv2"])
    s3, t3 = _bn_fold(params["g3"], params["be3"], params["rm3"], params["rv3"])

    # Fold BN2 into proj2 (exact: no nonlinearity between BN2 and proj2).
    w2f = params["w2"] * s2[None, :]
    b2f = params["b2"] + params["w2"] @ t2

    eye_b = jnp.eye(B, dtype=jnp.float32)
    w1blk = jnp.kron(eye_b, params["w1"].astype(jnp.float32))          # (BC, BC)
    w2blk = jnp.kron(eye_b, w2f.astype(jnp.float32))                   # (BC, BC)
    mask = jnp.kron(eye_b, jnp.ones((C, C), jnp.float32))              # (BC, BC)

    def tile_col(v):                                                   # (C,) -> (BC, 1)
        return jnp.tile(v.astype(jnp.float32), B)[:, None]

    vecs = jnp.concatenate(
        [tile_col(params["b1"]), tile_col(s1), tile_col(t1),
         tile_col(b2f), tile_col(s3), tile_col(t3)], axis=1)           # (BC, 6)

    wg_tiled = jnp.tile(params["wg"].T.astype(jnp.float32), (B, 1))    # (BC, K)
    bg_row = params["bg"].astype(jnp.float32)[None, :]                 # (1, K)

    filt = jnp.concatenate([params["fr"], params["fi"]], axis=-1)      # (K, C, 2F)
    filt_tiled = jnp.tile(filt.astype(jnp.float32), (1, B, 1))         # (K, BC, 2F)

    x2 = x.reshape(BC, T).astype(jnp.float32)                          # pure reshape, free

    def full_spec(shape):
        nd = len(shape)
        return pl.BlockSpec(shape, lambda i, _nd=nd: (0,) * _nd)

    out = pl.pallas_call(
        functools.partial(_global_block_kernel, K=K, F=F),
        out_shape=jax.ShapeDtypeStruct((BC, T), jnp.float32),
        grid=(1,),
        in_specs=[
            full_spec((BC, T)),
            full_spec((BC, BC)), full_spec((BC, BC)),
            full_spec((BC, 6)),
            full_spec((BC, BC)),
            full_spec((BC, K)), full_spec((1, K)),
            full_spec((K, BC, 2 * F)),
            full_spec((T, 2 * F)), full_spec((2 * F, T)),
        ],
        out_specs=full_spec((BC, T)),
        compiler_params=pltpu.CompilerParams(dimension_semantics=("parallel",)),
    )(x2, w1blk, w2blk, vecs, mask, wg_tiled, bg_row, filt_tiled, dft_fwd, dft_inv)

    return out.reshape(B, C, T)


def ref_forward(x, params):
    """Pure-JAX reference (uses jnp.fft) mirroring the PyTorch forward in eval mode."""
    def bn(h, g, b, m, v):
        return ((h - m[None, :, None]) / jnp.sqrt(v[None, :, None] + _EPS)
                * g[None, :, None] + b[None, :, None])

    B, C, T = x.shape
    h = jnp.einsum('oc,bct->bot', params["w1"], x) + params["b1"][None, :, None]
    h = jax.nn.relu(h)
    h = bn(h, params["g1"], params["be1"], params["rm1"], params["rv1"])

    pooled = h.mean(-1)                                    # (B, C)
    logits = pooled @ params["wg"].T + params["bg"]        # (B, K)
    gate = jax.nn.softmax(logits, axis=-1)
    filt = params["fr"] + 1j * params["fi"]                # (K, C, F)
    w = jnp.einsum('bk,kcf->bcf', gate.astype(jnp.complex64), filt)
    X = jnp.fft.rfft(h, axis=-1, norm='ortho')
    y = jnp.fft.irfft(X * w, n=T, axis=-1, norm='ortho').astype(jnp.float32)

    y = jax.nn.relu(y)
    y = bn(y, params["g2"], params["be2"], params["rm2"], params["rv2"])
    y = jnp.einsum('oc,bct->bot', params["w2"], y) + params["b2"][None, :, None]
    y = jax.nn.relu(y)
    y = bn(y, params["g3"], params["be3"], params["rm3"], params["rv3"])
    return x + y


if __name__ == "__main__":
    B, C, T, K = 2, 32, 16, 4          # batch, dim, time, experts
    F = T // 2 + 1

    key = jax.random.PRNGKey(0)
    ks = jax.random.split(key, 22)

    def rnd(k, shp, s=0.1):
        return (s * jax.random.normal(k, shp)).astype(jnp.float32)

    params = dict(
        w1=rnd(ks[0], (C, C)), b1=rnd(ks[1], (C,)),
        w2=rnd(ks[2], (C, C)), b2=rnd(ks[3], (C,)),
        wg=rnd(ks[4], (K, C)), bg=rnd(ks[5], (K,)),
        fr=rnd(ks[6], (K, C, F), 0.02), fi=rnd(ks[7], (K, C, F), 0.02),
        g1=1.0 + rnd(ks[8], (C,)), be1=rnd(ks[9], (C,)),
        rm1=rnd(ks[10], (C,)), rv1=1.0 + jnp.abs(rnd(ks[11], (C,))),
        g2=1.0 + rnd(ks[12], (C,)), be2=rnd(ks[13], (C,)),
        rm2=rnd(ks[14], (C,)), rv2=1.0 + jnp.abs(rnd(ks[15], (C,))),
        g3=1.0 + rnd(ks[16], (C,)), be3=rnd(ks[17], (C,)),
        rm3=rnd(ks[18], (C,)), rv3=1.0 + jnp.abs(rnd(ks[19], (C,))),
    )
    x = jax.random.normal(ks[21], (B, C, T), dtype=jnp.float32)

    out = jax.block_until_ready(global_block_forward(x, params))
    ref = jax.block_until_ready(ref_forward(x, params))

    assert out.shape == (B, C, T) and out.dtype == jnp.float32
    if not np.allclose(np.asarray(out), np.asarray(ref), atol=1e-2, rtol=1e-2):
        raise AssertionError("Pallas kernel disagrees with JAX reference")
    print("KERNEL_OK")
</pallas_src>

<mosaic_0001>
module attributes {stable_mosaic.version = 11 : i64} {
  func.func @_global_block_kernel(%arg0: i32, %arg1: memref<64x16xf32, #tpu.memory_space<vmem>>, %arg2: memref<64x64xf32, #tpu.memory_space<vmem>>, %arg3: memref<64x64xf32, #tpu.memory_space<vmem>>, %arg4: memref<64x6xf32, #tpu.memory_space<vmem>>, %arg5: memref<64x64xf32, #tpu.memory_space<vmem>>, %arg6: memref<64x4xf32, #tpu.memory_space<vmem>>, %arg7: memref<1x4xf32, #tpu.memory_space<vmem>>, %arg8: memref<4x64x18xf32, #tpu.memory_space<vmem>>, %arg9: memref<16x18xf32, #tpu.memory_space<vmem>>, %arg10: memref<18x16xf32, #tpu.memory_space<vmem>>, %arg11: memref<64x16xf32, #tpu.memory_space<vmem>>) attributes {dimension_semantics = [#tpu.dimension_semantics<parallel>], iteration_bounds = array<i64: 1>, scalar_prefetch = 0 : i64, scratch_operands = 0 : i64, tpu.core_type = #tpu.core_type<tc>, window_params = [{pipeline_mode = #tpu.pipeline_mode<synchronous>, transform_indices = @transform_0, window_bounds = array<i64: 64, 16>}, {pipeline_mode = #tpu.pipeline_mode<synchronous>, transform_indices = @transform_1, window_bounds = array<i64: 64, 64>}, {pipeline_mode = #tpu.pipeline_mode<synchronous>, transform_indices = @transform_2, window_bounds = array<i64: 64, 64>}, {pipeline_mode = #tpu.pipeline_mode<synchronous>, transform_indices = @transform_3, window_bounds = array<i64: 64, 6>}, {pipeline_mode = #tpu.pipeline_mode<synchronous>, transform_indices = @transform_4, window_bounds = array<i64: 64, 64>}, {pipeline_mode = #tpu.pipeline_mode<synchronous>, transform_indices = @transform_5, window_bounds = array<i64: 64, 4>}, {pipeline_mode = #tpu.pipeline_mode<synchronous>, transform_indices = @transform_6, window_bounds = array<i64: 1, 4>}, {pipeline_mode = #tpu.pipeline_mode<synchronous>, transform_indices = @transform_7, window_bounds = array<i64: 4, 64, 18>}, {pipeline_mode = #tpu.pipeline_mode<synchronous>, transform_indices = @transform_8, window_bounds = array<i64: 16, 18>}, {pipeline_mode = #tpu.pipeline_mode<synchronous>, transform_indices = @transform_9, window_bounds = array<i64: 18, 16>}, {pipeline_mode = #tpu.pipeline_mode<synchronous>, transform_indices = @transform_10, window_bounds = array<i64: 64, 16>}]} {
    %c0 = arith.constant 0 : index
    %c0_0 = arith.constant 0 : index
    %0 = vector.load %arg1[%c0, %c0_0] : memref<64x16xf32, #tpu.memory_space<vmem>>, vector<64x16xf32>
    %c0_1 = arith.constant 0 : index
    %c0_2 = arith.constant 0 : index
    %1 = vector.load %arg4[%c0_1, %c0_2] : memref<64x6xf32, #tpu.memory_space<vmem>>, vector<64x1xf32>
    %c0_3 = arith.constant 0 : index
    %c1 = arith.constant 1 : index
    %2 = vector.load %arg4[%c0_3, %c1] : memref<64x6xf32, #tpu.memory_space<vmem>>, vector<64x1xf32>
    %c0_4 = arith.constant 0 : index
    %c2 = arith.constant 2 : index
    %3 = vector.load %arg4[%c0_4, %c2] : memref<64x6xf32, #tpu.memory_space<vmem>>, vector<64x1xf32>
    %c0_5 = arith.constant 0 : index
    %c3 = arith.constant 3 : index
    %4 = vector.load %arg4[%c0_5, %c3] : memref<64x6xf32, #tpu.memory_space<vmem>>, vector<64x1xf32>
    %c0_6 = arith.constant 0 : index
    %c4 = arith.constant 4 : index
    %5 = vector.load %arg4[%c0_6, %c4] : memref<64x6xf32, #tpu.memory_space<vmem>>, vector<64x1xf32>
    %c0_7 = arith.constant 0 : index
    %c5 = arith.constant 5 : index
    %6 = vector.load %arg4[%c0_7, %c5] : memref<64x6xf32, #tpu.memory_space<vmem>>, vector<64x1xf32>
    %c0_8 = arith.constant 0 : index
    %c0_9 = arith.constant 0 : index
    %7 = vector.load %arg2[%c0_8, %c0_9] : memref<64x64xf32, #tpu.memory_space<vmem>>, vector<64x64xf32>
    %cst = arith.constant dense<0.000000e+00> : vector<64x16xf32>
    %8 = tpu.matmul %7, %0, %cst {dimension_numbers = #tpu.dot_dimension_numbers<[1], [0], [0], [1], [0, 0, 1, 1], [], []>} : vector<64x64xf32>, vector<64x16xf32>, vector<64x16xf32> -> vector<64x16xf32>
    %9 = vector.broadcast %1 : vector<64x1xf32> to vector<64x16xf32>
    %10 = arith.addf %8, %9 : vector<64x16xf32>
    %cst_10 = arith.constant 0.000000e+00 : f32
    %11 = vector.broadcast %cst_10 : f32 to vector<64x16xf32>
    %12 = arith.maximumf %10, %11 : vector<64x16xf32>
    %13 = vector.broadcast %2 : vector<64x1xf32> to vector<64x16xf32>
    %14 = arith.mulf %12, %13 : vector<64x16xf32>
    %15 = vector.broadcast %3 : vector<64x1xf32> to vector<64x16xf32>
    %16 = arith.addf %14, %15 : vector<64x16xf32>
    %cst_11 = arith.constant dense<0.000000e+00> : vector<64xf32>
    %17 = vector.multi_reduction <add>, %16, %cst_11 [1] : vector<64x16xf32> to vector<64xf32>
    %18 = vector.shape_cast %17 : vector<64xf32> to vector<64x1xf32>
    %cst_12 = arith.constant 1.600000e+01 : f32
    %19 = vector.broadcast %cst_12 : f32 to vector<64x1xf32>
    %20 = arith.divf %18, %19 : vector<64x1xf32>
    %c0_13 = arith.constant 0 : index
    %c0_14 = arith.constant 0 : index
    %21 = vector.load %arg5[%c0_13, %c0_14] : memref<64x64xf32, #tpu.memory_space<vmem>>, vector<64x64xf32>
    %c0_15 = arith.constant 0 : index
    %c0_16 = arith.constant 0 : index
    %22 = vector.load %arg6[%c0_15, %c0_16] : memref<64x4xf32, #tpu.memory_space<vmem>>, vector<64x4xf32>
    %23 = vector.broadcast %20 : vector<64x1xf32> to vector<64x4xf32>
    %24 = arith.mulf %23, %22 : vector<64x4xf32>
    %cst_17 = arith.constant dense<0.000000e+00> : vector<64x4xf32>
    %25 = tpu.matmul %21, %24, %cst_17 {dimension_numbers = #tpu.dot_dimension_numbers<[1], [0], [0], [1], [0, 0, 1, 1], [], []>} : vector<64x64xf32>, vector<64x4xf32>, vector<64x4xf32> -> vector<64x4xf32>
    %c0_18 = arith.constant 0 : index
    %c0_19 = arith.constant 0 : index
    %26 = vector.load %arg7[%c0_18, %c0_19] : memref<1x4xf32, #tpu.memory_space<vmem>>, vector<1x4xf32>
    %27 = vector.broadcast %26 : vector<1x4xf32> to vector<64x4xf32>
    %28 = arith.addf %25, %27 : vector<64x4xf32>
    %cst_20 = arith.constant dense<0xFF800000> : vector<64xf32>
    %29 = vector.multi_reduction <maximumf>, %28, %cst_20 [1] : vector<64x4xf32> to vector<64xf32>
    %30 = vector.shape_cast %29 : vector<64xf32> to vector<64x1xf32>
    %31 = vector.broadcast %30 : vector<64x1xf32> to vector<64x4xf32>
    %32 = arith.subf %28, %31 : vector<64x4xf32>
    %33 = math.exp %32 : vector<64x4xf32>
    %cst_21 = arith.constant dense<0.000000e+00> : vector<64xf32>
    %34 = vector.multi_reduction <add>, %33, %cst_21 [1] : vector<64x4xf32> to vector<64xf32>
    %35 = vector.shape_cast %34 : vector<64xf32> to vector<64x1xf32>
    %36 = tpu.reciprocal %35 {approx = true} : vector<64x1xf32> -> vector<64x1xf32>
    %37 = vector.broadcast %36 : vector<64x1xf32> to vector<64x4xf32>
    %38 = arith.mulf %33, %37 : vector<64x4xf32>
    %39 = vector.extract_strided_slice %38 {offsets = [0, 0], sizes = [64, 1], strides = [1, 1]} : vector<64x4xf32> to vector<64x1xf32>
    %c0_22 = arith.constant 0 : index
    %c0_23 = arith.constant 0 : index
    %c0_24 = arith.constant 0 : index
    %40 = vector.load %arg8[%c0_22, %c0_23, %c0_24] : memref<4x64x18xf32, #tpu.memory_space<vmem>>, vector<1x64x18xf32>
    %41 = vector.shape_cast %40 : vector<1x64x18xf32> to vector<64x18xf32>
    %42 = vector.broadcast %39 : vector<64x1xf32> to vector<64x18xf32>
    %43 = arith.mulf %42, %41 : vector<64x18xf32>
    %44 = vector.extract_strided_slice %38 {offsets = [0, 1], sizes = [64, 1], strides = [1, 1]} : vector<64x4xf32> to vector<64x1xf32>
    %c1_25 = arith.constant 1 : index
    %c0_26 = arith.constant 0 : index
    %c0_27 = arith.constant 0 : index
    %45 = vector.load %arg8[%c1_25, %c0_26, %c0_27] : memref<4x64x18xf32, #tpu.memory_space<vmem>>, vector<1x64x18xf32>
    %46 = vector.shape_cast %45 : vector<1x64x18xf32> to vector<64x18xf32>
    %47 = vector.broadcast %44 : vector<64x1xf32> to vector<64x18xf32>
    %48 = arith.mulf %47, %46 : vector<64x18xf32>
    %49 = arith.addf %43, %48 : vector<64x18xf32>
    %50 = vector.extract_strided_slice %38 {offsets = [0, 2], sizes = [64, 1], strides = [1, 1]} : vector<64x4xf32> to vector<64x1xf32>
    %c2_28 = arith.constant 2 : index
    %c0_29 = arith.constant 0 : index
    %c0_30 = arith.constant 0 : index
    %51 = vector.load %arg8[%c2_28, %c0_29, %c0_30] : memref<4x64x18xf32, #tpu.memory_space<vmem>>, vector<1x64x18xf32>
    %52 = vector.shape_cast %51 : vector<1x64x18xf32> to vector<64x18xf32>
    %53 = vector.broadcast %50 : vector<64x1xf32> to vector<64x18xf32>
    %54 = arith.mulf %53, %52 : vector<64x18xf32>
    %55 = arith.addf %49, %54 : vector<64x18xf32>
    %56 = vector.extract_strided_slice %38 {offsets = [0, 3], sizes = [64, 1], strides = [1, 1]} : vector<64x4xf32> to vector<64x1xf32>
    %c3_31 = arith.constant 3 : index
    %c0_32 = arith.constant 0 : index
    %c0_33 = arith.constant 0 : index
    %57 = vector.load %arg8[%c3_31, %c0_32, %c0_33] : memref<4x64x18xf32, #tpu.memory_space<vmem>>, vector<1x64x18xf32>
    %58 = vector.shape_cast %57 : vector<1x64x18xf32> to vector<64x18xf32>
    %59 = vector.broadcast %56 : vector<64x1xf32> to vector<64x18xf32>
    %60 = arith.mulf %59, %58 : vector<64x18xf32>
    %61 = arith.addf %55, %60 : vector<64x18xf32>
    %c0_34 = arith.constant 0 : index
    %c0_35 = arith.constant 0 : index
    %62 = vector.load %arg9[%c0_34, %c0_35] : memref<16x18xf32, #tpu.memory_space<vmem>>, vector<16x18xf32>
    %cst_36 = arith.constant dense<0.000000e+00> : vector<64x18xf32>
    %63 = tpu.matmul %16, %62, %cst_36 {dimension_numbers = #tpu.dot_dimension_numbers<[1], [0], [0], [1], [0, 0, 1, 1], [], []>} : vector<64x16xf32>, vector<16x18xf32>, vector<64x18xf32> -> vector<64x18xf32>
    %64 = vector.extract_strided_slice %63 {offsets = [0, 0], sizes = [64, 9], strides = [1, 1]} : vector<64x18xf32> to vector<64x9xf32>
    %65 = vector.extract_strided_slice %63 {offsets = [0, 9], sizes = [64, 9], strides = [1, 1]} : vector<64x18xf32> to vector<64x9xf32>
    %66 = vector.extract_strided_slice %61 {offsets = [0, 0], sizes = [64, 9], strides = [1, 1]} : vector<64x18xf32> to vector<64x9xf32>
    %67 = vector.extract_strided_slice %61 {offsets = [0, 9], sizes = [64, 9], strides = [1, 1]} : vector<64x18xf32> to vector<64x9xf32>
    %68 = arith.mulf %64, %66 : vector<64x9xf32>
    %69 = arith.mulf %65, %67 : vector<64x9xf32>
    %70 = arith.subf %68, %69 : vector<64x9xf32>
    %71 = arith.mulf %64, %67 : vector<64x9xf32>
    %72 = arith.mulf %65, %66 : vector<64x9xf32>
    %73 = arith.addf %71, %72 : vector<64x9xf32>
    %74 = tpu.concatenate %70, %73 in 1 : vector<64x9xf32>, vector<64x9xf32> -> vector<64x18xf32>
    %c0_37 = arith.constant 0 : index
    %c0_38 = arith.constant 0 : index
    %75 = vector.load %arg10[%c0_37, %c0_38] : memref<18x16xf32, #tpu.memory_space<vmem>>, vector<18x16xf32>
    %cst_39 = arith.constant dense<0.000000e+00> : vector<64x16xf32>
    %76 = tpu.matmul %74, %75, %cst_39 {dimension_numbers = #tpu.dot_dimension_numbers<[1], [0], [0], [1], [0, 0, 1, 1], [], []>} : vector<64x18xf32>, vector<18x16xf32>, vector<64x16xf32> -> vector<64x16xf32>
    %cst_40 = arith.constant 0.000000e+00 : f32
    %77 = vector.broadcast %cst_40 : f32 to vector<64x16xf32>
    %78 = arith.maximumf %76, %77 : vector<64x16xf32>
    %c0_41 = arith.constant 0 : index
    %c0_42 = arith.constant 0 : index
    %79 = vector.load %arg3[%c0_41, %c0_42] : memref<64x64xf32, #tpu.memory_space<vmem>>, vector<64x64xf32>
    %cst_43 = arith.constant dense<0.000000e+00> : vector<64x16xf32>
    %80 = tpu.matmul %79, %78, %cst_43 {dimension_numbers = #tpu.dot_dimension_numbers<[1], [0], [0], [1], [0, 0, 1, 1], [], []>} : vector<64x64xf32>, vector<64x16xf32>, vector<64x16xf32> -> vector<64x16xf32>
    %81 = vector.broadcast %4 : vector<64x1xf32> to vector<64x16xf32>
    %82 = arith.addf %80, %81 : vector<64x16xf32>
    %cst_44 = arith.constant 0.000000e+00 : f32
    %83 = vector.broadcast %cst_44 : f32 to vector<64x16xf32>
    %84 = arith.maximumf %82, %83 : vector<64x16xf32>
    %85 = vector.broadcast %5 : vector<64x1xf32> to vector<64x16xf32>
    %86 = arith.mulf %84, %85 : vector<64x16xf32>
    %87 = arith.addf %0, %86 : vector<64x16xf32>
    %88 = vector.broadcast %6 : vector<64x1xf32> to vector<64x16xf32>
    %89 = arith.addf %87, %88 : vector<64x16xf32>
    %c0_45 = arith.constant 0 : index
    %c0_46 = arith.constant 0 : index
    %90 = vector.load %arg11[%c0_45, %c0_46] : memref<64x16xf32, #tpu.memory_space<vmem>>, vector<64x16xf32>
    tpu.vector_store %arg11[%c0_45, %c0_46], %89 {strides = array<i32>} : memref<64x16xf32, #tpu.memory_space<vmem>>, vector<64x16xf32>,
    return
  }
  func.func @transform_0(%arg0: i32) -> (i32, i32) {
    %c0_i32 = arith.constant 0 : i32
    %c0_i32_0 = arith.constant 0 : i32
    %c0_i32_1 = arith.constant 0 : i32
    return %c0_i32, %c0_i32_0 : i32, i32
  }
  func.func @transform_1(%arg0: i32) -> (i32, i32) {
    %c0_i32 = arith.constant 0 : i32
    %c0_i32_0 = arith.constant 0 : i32
    %c0_i32_1 = arith.constant 0 : i32
    return %c0_i32, %c0_i32_0 : i32, i32
  }
  func.func @transform_2(%arg0: i32) -> (i32, i32) {
    %c0_i32 = arith.constant 0 : i32
    %c0_i32_0 = arith.constant 0 : i32
    %c0_i32_1 = arith.constant 0 : i32
    return %c0_i32, %c0_i32_0 : i32, i32
  }
  func.func @transform_3(%arg0: i32) -> (i32, i32) {
    %c0_i32 = arith.constant 0 : i32
    %c0_i32_0 = arith.constant 0 : i32
    %c0_i32_1 = arith.constant 0 : i32
    return %c0_i32, %c0_i32_0 : i32, i32
  }
  func.func @transform_4(%arg0: i32) -> (i32, i32) {
    %c0_i32 = arith.constant 0 : i32
    %c0_i32_0 = arith.constant 0 : i32
    %c0_i32_1 = arith.constant 0 : i32
    return %c0_i32, %c0_i32_0 : i32, i32
  }
  func.func @transform_5(%arg0: i32) -> (i32, i32) {
    %c0_i32 = arith.constant 0 : i32
    %c0_i32_0 = arith.constant 0 : i32
    %c0_i32_1 = arith.constant 0 : i32
    return %c0_i32, %c0_i32_0 : i32, i32
  }
  func.func @transform_6(%arg0: i32) -> (i32, i32) {
    %c0_i32 = arith.constant 0 : i32
    %c0_i32_0 = arith.constant 0 : i32
    %c0_i32_1 = arith.constant 0 : i32
    return %c0_i32, %c0_i32_0 : i32, i32
  }
  func.func @transform_7(%arg0: i32) -> (i32, i32, i32) {
    %c0_i32 = arith.constant 0 : i32
    %c0_i32_0 = arith.constant 0 : i32
    %c0_i32_1 = arith.constant 0 : i32
    %c0_i32_2 = arith.constant 0 : i32
    return %c0_i32, %c0_i32_0, %c0_i32_1 : i32, i32, i32
  }
  func.func @transform_8(%arg0: i32) -> (i32, i32) {
    %c0_i32 = arith.constant 0 : i32
    %c0_i32_0 = arith.constant 0 : i32
    %c0_i32_1 = arith.constant 0 : i32
    return %c0_i32, %c0_i32_0 : i32, i32
  }
  func.func @transform_9(%arg0: i32) -> (i32, i32) {
    %c0_i32 = arith.constant 0 : i32
    %c0_i32_0 = arith.constant 0 : i32
    %c0_i32_1 = arith.constant 0 : i32
    return %c0_i32, %c0_i32_0 : i32, i32
  }
  func.func @transform_10(%arg0: i32) -> (i32, i32) {
    %c0_i32 = arith.constant 0 : i32
    %c0_i32_0 = arith.constant 0 : i32
    %c0_i32_1 = arith.constant 0 : i32
    return %c0_i32, %c0_i32_0 : i32, i32
  }
}

</mosaic_0001>

<llo_original>
// kernel: tpu_custom_call.1
$region0: #{tpu_custom_call.1}
  #allocation0 [shape = 'u32[]', space=smem, size = 0x4, offset = 0x4, fixed_abs, tag = 'smem constant byte address 0x4 - core index']
  #allocation1 [shape = 'u32[144,128]{1,0:T(1,128)}', space=vmem, size = 0x12000, scoped, tag = 'internal scratch']
  %s0 = inlined_call_operand.vmem [shape: f32[64,16], index: 0, kind: input, shape index: {}]
  %s1 = inlined_call_operand.vmem [shape: f32[64,64], index: 1, kind: input, shape index: {}]
  %s2 = inlined_call_operand.vmem [shape: f32[64,64], index: 2, kind: input, shape index: {}]
  %s3 = inlined_call_operand.vmem [shape: f32[64,6], index: 3, kind: input, shape index: {}]
  %s4 = inlined_call_operand.vmem [shape: f32[64,64], index: 4, kind: input, shape index: {}]
  %s5 = inlined_call_operand.vmem [shape: f32[64,4], index: 5, kind: input, shape index: {}]
  %s6 = inlined_call_operand.vmem [shape: f32[1,4], index: 6, kind: input, shape index: {}]
  %s7 = inlined_call_operand.vmem [shape: f32[4,64,18], index: 7, kind: input, shape index: {}]
  %s8 = inlined_call_operand.vmem [shape: f32[16,18], index: 8, kind: input, shape index: {}]
  %s9 = inlined_call_operand.vmem [shape: f32[18,16], index: 9, kind: input, shape index: {}]
  %s10 = inlined_call_operand.vmem [shape: f32[64,16], index: 10, kind: output, shape index: {}]
  %s11 = sld [smem:[#allocation0]]
  $region50: #{tpu_custom_call.1} parent=0
    _
  %s13 = ssub.s32 1, %s11
  %s14 = scalar_select 0, %s13, %s11
  // Predicated region
  $region2: #{tpu_custom_call.1} parent=0 // pred_check
    _
  $region3: #{tpu_custom_call.1} parent=0 // pred_check_branch
    %16 = sbr.rel (0) target = $region5
  $region4: #{tpu_custom_call.1} parent=0 // pred_region
    _
  $region5: #{tpu_custom_call.1} parent=0 // pred_fallthru
    _
  // Predicated region
  $region6: #{tpu_custom_call.1} parent=0 // pred_check
    _
  $region7: #{tpu_custom_call.1} parent=0 // pred_check_branch
    %18 = sbr.rel (0) target = $region9
  $region8: #{tpu_custom_call.1} parent=0 // pred_region
    _
  $region9: #{tpu_custom_call.1} parent=0 // pred_fallthru
    _
  // Predicated region
  $region10: #{tpu_custom_call.1} parent=0 // pred_check
    _
  $region11: #{tpu_custom_call.1} parent=0 // pred_check_branch
    %20 = sbr.rel (0) target = $region13
  $region12: #{tpu_custom_call.1} parent=0 // pred_region
    _
  $region13: #{tpu_custom_call.1} parent=0 // pred_fallthru
    _
  // Predicated region
  $region14: #{tpu_custom_call.1} parent=0 // pred_check
    _
  $region15: #{tpu_custom_call.1} parent=0 // pred_check_branch
    %22 = sbr.rel (0) target = $region17
  $region16: #{tpu_custom_call.1} parent=0 // pred_region
    _
  $region17: #{tpu_custom_call.1} parent=0 // pred_fallthru
    _
  // Predicated region
  $region18: #{tpu_custom_call.1} parent=0 // pred_check
    _
  $region19: #{tpu_custom_call.1} parent=0 // pred_check_branch
    %24 = sbr.rel (0) target = $region21
  $region20: #{tpu_custom_call.1} parent=0 // pred_region
    _
  $region21: #{tpu_custom_call.1} parent=0 // pred_fallthru
    _
  // Predicated region
  $region22: #{tpu_custom_call.1} parent=0 // pred_check
    _
  $region23: #{tpu_custom_call.1} parent=0 // pred_check_branch
    %26 = sbr.rel (0) target = $region25
  $region24: #{tpu_custom_call.1} parent=0 // pred_region
    _
  $region25: #{tpu_custom_call.1} parent=0 // pred_fallthru
    _
  // Predicated region
  $region26: #{tpu_custom_call.1} parent=0 // pred_check
    _
  $region27: #{tpu_custom_call.1} parent=0 // pred_check_branch
    %28 = sbr.rel (0) target = $region29
  $region28: #{tpu_custom_call.1} parent=0 // pred_region
    _
  $region29: #{tpu_custom_call.1} parent=0 // pred_fallthru
    _
  // Predicated region
  $region30: #{tpu_custom_call.1} parent=0 // pred_check
    _
  $region31: #{tpu_custom_call.1} parent=0 // pred_check_branch
    %30 = sbr.rel (0) target = $region33
  $region32: #{tpu_custom_call.1} parent=0 // pred_region
    _
  $region33: #{tpu_custom_call.1} parent=0 // pred_fallthru
    _
  // Predicated region
  $region34: #{tpu_custom_call.1} parent=0 // pred_check
    _
  $region35: #{tpu_custom_call.1} parent=0 // pred_check_branch
    %32 = sbr.rel (0) target = $region37
  $region36: #{tpu_custom_call.1} parent=0 // pred_region
    _
  $region37: #{tpu_custom_call.1} parent=0 // pred_fallthru
    _
  // Predicated region
  $region38: #{tpu_custom_call.1} parent=0 // pred_check
    _
  $region39: #{tpu_custom_call.1} parent=0 // pred_check_branch
    %34 = sbr.rel (0) target = $region41
  $region40: #{tpu_custom_call.1} parent=0 // pred_region
    _
  $region41: #{tpu_custom_call.1} parent=0 // pred_fallthru
    _
  %v35 = vld [vmem:[%s0] sm:$0xff]
  %v36 = vld [vmem:[%s0 + $0x8] sm:$0xff]
  %v37 = vld [vmem:[%s0 + $0x10] sm:$0xff]
  %v38 = vld [vmem:[%s0 + $0x18] sm:$0xff]
  %v39 = vld [vmem:[%s0 + $0x20] sm:$0xff]
  %v40 = vld [vmem:[%s0 + $0x28] sm:$0xff]
  %v41 = vld [vmem:[%s0 + $0x30] sm:$0xff]
  %v42 = vld [vmem:[%s0 + $0x38] sm:$0xff]
  %v43 = vld [vmem:[%s3] sm:$0xff]
  %v44 = vld [vmem:[%s3 + $0x8] sm:$0xff]
  %v45 = vld [vmem:[%s3 + $0x10] sm:$0xff]
  %v46 = vld [vmem:[%s3 + $0x18] sm:$0xff]
  %v47 = vld [vmem:[%s3 + $0x20] sm:$0xff]
  %v48 = vld [vmem:[%s3 + $0x28] sm:$0xff]
  %v49 = vld [vmem:[%s3 + $0x30] sm:$0xff]
  %v50 = vld [vmem:[%s3 + $0x38] sm:$0xff]
  %v51 = vld [vmem:[%s1] sm:$0xff]
  %v52 = vld [vmem:[%s1 + $0x8] sm:$0xff]
  %v53 = vld [vmem:[%s1 + $0x10] sm:$0xff]
  %v54 = vld [vmem:[%s1 + $0x18] sm:$0xff]
  %v55 = vld [vmem:[%s1 + $0x20] sm:$0xff]
  %v56 = vld [vmem:[%s1 + $0x28] sm:$0xff]
  %v57 = vld [vmem:[%s1 + $0x30] sm:$0xff]
  %v58 = vld [vmem:[%s1 + $0x38] sm:$0xff]
  %60 = vset.pattern.permute.xlu0 0
  %61 = vperm.xlu0 %60, %v43
  %v62 = vpop.permute.xlu0 %61
  %65 = vset.pattern.permute.xlu0 0
  %66 = vperm.xlu0 %65, %v44
  %v67 = vpop.permute.xlu0 %66
  %70 = vset.pattern.permute.xlu0 0
  %71 = vperm.xlu0 %70, %v45
  %v72 = vpop.permute.xlu0 %71
  %75 = vset.pattern.permute.xlu0 0
  %76 = vperm.xlu0 %75, %v46
  %v77 = vpop.permute.xlu0 %76
  %80 = vset.pattern.permute.xlu0 0
  %81 = vperm.xlu0 %80, %v47
  %v82 = vpop.permute.xlu0 %81
  %85 = vset.pattern.permute.xlu0 0
  %86 = vperm.xlu0 %85, %v48
  %v87 = vpop.permute.xlu0 %86
  %90 = vset.pattern.permute.xlu0 0
  %91 = vperm.xlu0 %90, %v49
  %v92 = vpop.permute.xlu0 %91
  %95 = vset.pattern.permute.xlu0 0
  %96 = vperm.xlu0 %95, %v50
  %v97 = vpop.permute.xlu0 %96
  %vm99 = vcmask 523264
  %v101 = vsel %vm99, %v51, 0
  %v104 = vsel %vm99, %v52, 0
  %v107 = vsel %vm99, %v53, 0
  %v110 = vsel %vm99, %v54, 0
  %v113 = vsel %vm99, %v55, 0
  %v116 = vsel %vm99, %v56, 0
  %v119 = vsel %vm99, %v57, 0
  %v122 = vsel %vm99, %v58, 0
  %124 = vmatprep.subr.mxu0 0.0
  %125 = vmatpush1.msra.mxu0 0.0
  %126 = vmatprep.subr.mxu0 0.0
  %127 = vmatpush1.msra.mxu0 0.0
  %128 = vmatprep.subr.mxu0 0.0
  %129 = vmatpush1.msra.mxu0 0.0
  %130 = vmatprep.subr.mxu0 0.0
  %131 = vmatpush1.msra.mxu0 0.0
  %132 = vmatprep.subr.mxu0 0.0
  %133 = vmatpush1.msra.mxu0 0.0
  %134 = vmatprep.subr.mxu0 0.0
  %135 = vmatpush1.msra.mxu0 0.0
  %136 = vmatprep.subr.mxu0 0.0
  %137 = vmatpush1.msra.mxu0 0.0
  %138 = vmatprep.subr.mxu0 0.0
  %139 = vmatpush1.msra.mxu0 0.0
  %140 = vmatprep.subr.mxu0 0.0
  %141 = vmatpush1.msra.mxu0 %v42
  %142 = vmatprep.subr.mxu0 0.0
  %143 = vmatpush1.msra.mxu0 %v41
  %144 = vmatprep.subr.mxu0 0.0
  %145 = vmatpush1.msra.mxu0 %v40
  %146 = vmatprep.subr.mxu0 0.0
  %147 = vmatpush1.msra.mxu0 %v39
  %148 = vmatprep.subr.mxu0 0.0
  %149 = vmatpush1.msra.mxu0 %v38
  %150 = vmatprep.subr.mxu0 0.0
  %151 = vmatpush1.msra.mxu0 %v37
  %152 = vmatprep.subr.mxu0 0.0
  %153 = vmatpush1.msra.mxu0 %v36
  %154 = vmatprep.subr.mxu0 0.0
  %155 = vmatpush1.msra.mxu0 %v35
  %156 = vmatprep.subr.mxu0 0.0
  %157 = vmatpush2.msra.mxu0 0.0
  %158 = vmatprep.subr.mxu0 0.0
  %159 = vmatpush2.msra.mxu0 0.0
  %160 = vmatprep.subr.mxu0 0.0
  %161 = vmatpush2.msra.mxu0 0.0
  %162 = vmatprep.subr.mxu0 0.0
  %163 = vmatpush2.msra.mxu0 0.0
  %164 = vmatprep.subr.mxu0 0.0
  %165 = vmatpush2.msra.mxu0 0.0
  %166 = vmatprep.subr.mxu0 0.0
  %167 = vmatpush2.msra.mxu0 0.0
  %168 = vmatprep.subr.mxu0 0.0
  %169 = vmatpush2.msra.mxu0 0.0
  %170 = vmatprep.subr.mxu0 0.0
  %171 = vmatpush2.msra.mxu0 0.0
  %172 = vmatprep.subr.mxu0 0.0
  %173 = vmatpush2.msra.mxu0 0.0
  %174 = vmatprep.subr.mxu0 0.0
  %175 = vmatpush2.msra.mxu0 0.0
  %176 = vmatprep.subr.mxu0 0.0
  %177 = vmatpush2.msra.mxu0 0.0
  %178 = vmatprep.subr.mxu0 0.0
  %179 = vmatpush2.msra.mxu0 0.0
  %180 = vmatprep.subr.mxu0 0.0
  %181 = vmatpush2.msra.mxu0 0.0
  %182 = vmatprep.subr.mxu0 0.0
  %183 = vmatpush2.msra.mxu0 0.0
  %184 = vmatprep.subr.mxu0 0.0
  %185 = vmatpush2.msra.mxu0 0.0
  %186 = vmatprep.subr.mxu0 0.0
  %187 = vmatpush2.msra.mxu0 0.0
  %188 = vmatprep.mubr.f32.mxu0 0.0
  %189 = vmatmul.mubr.f32.gmra.mxu0 %v101
  %v190 = vpop.f32.mrf.mxu0
  %v191 = vadd.f32 %v62, %v190
  %v192 = vpop.f32.mrf.mxu0
  %193 = vmatprep.mubr.f32.mxu0 0.0
  %194 = vmatmul.mubr.f32.gmra.mxu0 %v104
  %v195 = vpop.f32.mrf.mxu0
  %v196 = vadd.f32 %v67, %v195
  %v197 = vpop.f32.mrf.mxu0
  %198 = vmatprep.mubr.f32.mxu0 0.0
  %199 = vmatmul.mubr.f32.gmra.mxu0 %v107
  %v200 = vpop.f32.mrf.mxu0
  %v201 = vadd.f32 %v72, %v200
  %v202 = vpop.f32.mrf.mxu0
  %203 = vmatprep.mubr.f32.mxu0 0.0
  %204 = vmatmul.mubr.f32.gmra.mxu0 %v110
  %v205 = vpop.f32.mrf.mxu0
  %v206 = vadd.f32 %v77, %v205
  %v207 = vpop.f32.mrf.mxu0
  %208 = vmatprep.mubr.f32.mxu0 0.0
  %209 = vmatmul.mubr.f32.gmra.mxu0 %v113
  %v210 = vpop.f32.mrf.mxu0
  %v211 = vadd.f32 %v82, %v210
  %v212 = vpop.f32.mrf.mxu0
  %213 = vmatprep.mubr.f32.mxu0 0.0
  %214 = vmatmul.mubr.f32.gmra.mxu0 %v116
  %v215 = vpop.f32.mrf.mxu0
  %v216 = vadd.f32 %v87, %v215
  %v217 = vpop.f32.mrf.mxu0
  %218 = vmatprep.mubr.f32.mxu0 0.0
  %219 = vmatmul.mubr.f32.gmra.mxu0 %v119
  %v220 = vpop.f32.mrf.mxu0
  %v221 = vadd.f32 %v92, %v220
  %v222 = vpop.f32.mrf.mxu0
  %223 = vmatprep.mubr.f32.mxu0 0.0
  %224 = vmatmul.mubr.f32.gmra.mxu0 %v122
  %v225 = vpop.f32.mrf.mxu0
  %v226 = vadd.f32 %v97, %v225
  %v227 = vpop.f32.mrf.mxu0
  %228 = vdwg.mxu0
  %v229 = vmax.f32 %v191, 0.0
  %v230 = vmax.f32 %v196, 0.0
  %v231 = vmax.f32 %v201, 0.0
  %v232 = vmax.f32 %v206, 0.0
  %v233 = vmax.f32 %v211, 0.0
  %v234 = vmax.f32 %v216, 0.0
  %v235 = vmax.f32 %v221, 0.0
  %v236 = vmax.f32 %v226, 0.0
  %237 = vset.pattern.permute.xlu0 1
  %238 = vperm.xlu0 %237, %v43
  %v239 = vpop.permute.xlu0 %238
  %241 = vset.pattern.permute.xlu0 1
  %242 = vperm.xlu0 %241, %v44
  %v243 = vpop.permute.xlu0 %242
  %245 = vset.pattern.permute.xlu0 1
  %246 = vperm.xlu0 %245, %v45
  %v247 = vpop.permute.xlu0 %246
  %249 = vset.pattern.permute.xlu0 1
  %250 = vperm.xlu0 %249, %v46
  %v251 = vpop.permute.xlu0 %250
  %253 = vset.pattern.permute.xlu0 1
  %254 = vperm.xlu0 %253, %v47
  %v255 = vpop.permute.xlu0 %254
  %257 = vset.pattern.permute.xlu0 1
  %258 = vperm.xlu0 %257, %v48
  %v259 = vpop.permute.xlu0 %258
  %261 = vset.pattern.permute.xlu0 1
  %262 = vperm.xlu0 %261, %v49
  %v263 = vpop.permute.xlu0 %262
  %265 = vset.pattern.permute.xlu0 1
  %266 = vperm.xlu0 %265, %v50
  %v267 = vpop.permute.xlu0 %266
  %v269 = vmul.f32 %v229, %v239
  %v270 = vmul.f32 %v230, %v243
  %v271 = vmul.f32 %v231, %v247
  %v272 = vmul.f32 %v232, %v251
  %v273 = vmul.f32 %v233, %v255
  %v274 = vmul.f32 %v234, %v259
  %v275 = vmul.f32 %v235, %v263
  %v276 = vmul.f32 %v236, %v267
  %277 = vset.pattern.permute.xlu0 2
  %278 = vperm.xlu0 %277, %v43
  %v279 = vpop.permute.xlu0 %278
  %281 = vset.pattern.permute.xlu0 2
  %282 = vperm.xlu0 %281, %v44
  %v283 = vpop.permute.xlu0 %282
  %285 = vset.pattern.permute.xlu0 2
  %286 = vperm.xlu0 %285, %v45
  %v287 = vpop.permute.xlu0 %286
  %289 = vset.pattern.permute.xlu0 2
  %290 = vperm.xlu0 %289, %v46
  %v291 = vpop.permute.xlu0 %290
  %293 = vset.pattern.permute.xlu0 2
  %294 = vperm.xlu0 %293, %v47
  %v295 = vpop.permute.xlu0 %294
  %297 = vset.pattern.permute.xlu0 2
  %298 = vperm.xlu0 %297, %v48
  %v299 = vpop.permute.xlu0 %298
  %301 = vset.pattern.permute.xlu0 2
  %302 = vperm.xlu0 %301, %v49
  %v303 = vpop.permute.xlu0 %302
  %305 = vset.pattern.permute.xlu0 2
  %306 = vperm.xlu0 %305, %v50
  %v307 = vpop.permute.xlu0 %306
  %v309 = vadd.f32 %v269, %v279
  %v310 = vadd.f32 %v270, %v283
  %v311 = vadd.f32 %v271, %v287
  %v312 = vadd.f32 %v272, %v291
  %v313 = vadd.f32 %v273, %v295
  %v314 = vadd.f32 %v274, %v299
  %v315 = vadd.f32 %v275, %v303
  %v316 = vadd.f32 %v276, %v307
  %vm317 = vcmask 130048
  %v318 = vsel %vm317, %v309, 0.0
  %319 = vadd.xlane.f32.xlu0 %v318
  %v320 = vpop.xlane.xlu0 %319
  %v321 = vsel %vm317, %v310, 0.0
  %322 = vadd.xlane.f32.xlu0 %v321
  %v323 = vpop.xlane.xlu0 %322
  %v324 = vsel %vm317, %v311, 0.0
  %325 = vadd.xlane.f32.xlu0 %v324
  %v326 = vpop.xlane.xlu0 %325
  %v327 = vsel %vm317, %v312, 0.0
  %328 = vadd.xlane.f32.xlu0 %v327
  %v329 = vpop.xlane.xlu0 %328
  %v330 = vsel %vm317, %v313, 0.0
  %331 = vadd.xlane.f32.xlu0 %v330
  %v332 = vpop.xlane.xlu0 %331
  %v333 = vsel %vm317, %v314, 0.0
  %334 = vadd.xlane.f32.xlu0 %v333
  %v335 = vpop.xlane.xlu0 %334
  %v336 = vsel %vm317, %v315, 0.0
  %337 = vadd.xlane.f32.xlu0 %v336
  %v338 = vpop.xlane.xlu0 %337
  %v339 = vsel %vm317, %v316, 0.0
  %340 = vadd.xlane.f32.xlu0 %v339
  %v341 = vpop.xlane.xlu0 %340
  %v342 = vrcp.pop 16.0
  %v343 = vmul.f32 %v320, %v342
  %v344 = vmul.f32 %v323, %v342
  %v345 = vmul.f32 %v326, %v342
  %v346 = vmul.f32 %v329, %v342
  %v347 = vmul.f32 %v332, %v342
  %v348 = vmul.f32 %v335, %v342
  %v349 = vmul.f32 %v338, %v342
  %v350 = vmul.f32 %v341, %v342
  %v351 = vld [vmem:[%s4] sm:$0xff]
  %v352 = vld [vmem:[%s4 + $0x8] sm:$0xff]
  %v353 = vld [vmem:[%s4 + $0x10] sm:$0xff]
  %v354 = vld [vmem:[%s4 + $0x18] sm:$0xff]
  %v355 = vld [vmem:[%s4 + $0x20] sm:$0xff]
  %v356 = vld [vmem:[%s4 + $0x28] sm:$0xff]
  %v357 = vld [vmem:[%s4 + $0x30] sm:$0xff]
  %v358 = vld [vmem:[%s4 + $0x38] sm:$0xff]
  %v359 = vld [vmem:[%s5] sm:$0xff]
  %v360 = vld [vmem:[%s5 + $0x8] sm:$0xff]
  %v361 = vld [vmem:[%s5 + $0x10] sm:$0xff]
  %v362 = vld [vmem:[%s5 + $0x18] sm:$0xff]
  %v363 = vld [vmem:[%s5 + $0x20] sm:$0xff]
  %v364 = vld [vmem:[%s5 + $0x28] sm:$0xff]
  %v365 = vld [vmem:[%s5 + $0x30] sm:$0xff]
  %v366 = vld [vmem:[%s5 + $0x38] sm:$0xff]
  %v367 = vmul.f32 %v343, %v359
  %v368 = vmul.f32 %v344, %v360
  %v369 = vmul.f32 %v345, %v361
  %v370 = vmul.f32 %v346, %v362
  %v371 = vmul.f32 %v347, %v363
  %v372 = vmul.f32 %v348, %v364
  %v373 = vmul.f32 %v349, %v365
  %v374 = vmul.f32 %v350, %v366
  %v375 = vld [vmem:[%s6] sm:$0x1]
  %v377 = vlaneseq
  %v378 = vshrl.u32 %v377, 7
  %v379 = vsub.s32 0, %v378
  %v380 = vrot.slane %v375, %v379
  %v383 = vsel %vm99, %v351, 0
  %v386 = vsel %vm99, %v352, 0
  %v389 = vsel %vm99, %v353, 0
  %v392 = vsel %vm99, %v354, 0
  %v395 = vsel %vm99, %v355, 0
  %v398 = vsel %vm99, %v356, 0
  %v401 = vsel %vm99, %v357, 0
  %v404 = vsel %vm99, %v358, 0
  %406 = vmatprep.subr.mxu0 0.0
  %407 = vmatpush1.msra.mxu0 0.0
  %408 = vmatprep.subr.mxu0 0.0
  %409 = vmatpush1.msra.mxu0 0.0
  %410 = vmatprep.subr.mxu0 0.0
  %411 = vmatpush1.msra.mxu0 0.0
  %412 = vmatprep.subr.mxu0 0.0
  %413 = vmatpush1.msra.mxu0 0.0
  %414 = vmatprep.subr.mxu0 0.0
  %415 = vmatpush1.msra.mxu0 0.0
  %416 = vmatprep.subr.mxu0 0.0
  %417 = vmatpush1.msra.mxu0 0.0
  %418 = vmatprep.subr.mxu0 0.0
  %419 = vmatpush1.msra.mxu0 0.0
  %420 = vmatprep.subr.mxu0 0.0
  %421 = vmatpush1.msra.mxu0 0.0
  %422 = vmatprep.subr.mxu0 0.0
  %423 = vmatpush1.msra.mxu0 %v374
  %424 = vmatprep.subr.mxu0 0.0
  %425 = vmatpush1.msra.mxu0 %v373
  %426 = vmatprep.subr.mxu0 0.0
  %427 = vmatpush1.msra.mxu0 %v372
  %428 = vmatprep.subr.mxu0 0.0
  %429 = vmatpush1.msra.mxu0 %v371
  %430 = vmatprep.subr.mxu0 0.0
  %431 = vmatpush1.msra.mxu0 %v370
  %432 = vmatprep.subr.mxu0 0.0
  %433 = vmatpush1.msra.mxu0 %v369
  %434 = vmatprep.subr.mxu0 0.0
  %435 = vmatpush1.msra.mxu0 %v368
  %436 = vmatprep.subr.mxu0 0.0
  %437 = vmatpush1.msra.mxu0 %v367
  %438 = vmatprep.subr.mxu0 0.0
  %439 = vmatpush2.msra.mxu0 0.0
  %440 = vmatprep.subr.mxu0 0.0
  %441 = vmatpush2.msra.mxu0 0.0
  %442 = vmatprep.subr.mxu0 0.0
  %443 = vmatpush2.msra.mxu0 0.0
  %444 = vmatprep.subr.mxu0 0.0
  %445 = vmatpush2.msra.mxu0 0.0
  %446 = vmatprep.subr.mxu0 0.0
  %447 = vmatpush2.msra.mxu0 0.0
  %448 = vmatprep.subr.mxu0 0.0
  %449 = vmatpush2.msra.mxu0 0.0
  %450 = vmatprep.subr.mxu0 0.0
  %451 = vmatpush2.msra.mxu0 0.0
  %452 = vmatprep.subr.mxu0 0.0
  %453 = vmatpush2.msra.mxu0 0.0
  %454 = vmatprep.subr.mxu0 0.0
  %455 = vmatpush2.msra.mxu0 0.0
  %456 = vmatprep.subr.mxu0 0.0
  %457 = vmatpush2.msra.mxu0 0.0
  %458 = vmatprep.subr.mxu0 0.0
  %459 = vmatpush2.msra.mxu0 0.0
  %460 = vmatprep.subr.mxu0 0.0
  %461 = vmatpush2.msra.mxu0 0.0
  %462 = vmatprep.subr.mxu0 0.0
  %463 = vmatpush2.msra.mxu0 0.0
  %464 = vmatprep.subr.mxu0 0.0
  %465 = vmatpush2.msra.mxu0 0.0
  %466 = vmatprep.subr.mxu0 0.0
  %467 = vmatpush2.msra.mxu0 0.0
  %468 = vmatprep.subr.mxu0 0.0
  %469 = vmatpush2.msra.mxu0 0.0
  %470 = vmatprep.mubr.f32.mxu0 0.0
  %471 = vmatmul.mubr.f32.gmra.mxu0 %v383
  %v472 = vpop.f32.mrf.mxu0
  %v473 = vadd.f32 %v380, %v472
  %v474 = vpop.f32.mrf.mxu0
  %475 = vmatprep.mubr.f32.mxu0 0.0
  %476 = vmatmul.mubr.f32.gmra.mxu0 %v386
  %v477 = vpop.f32.mrf.mxu0
  %v478 = vadd.f32 %v380, %v477
  %v479 = vpop.f32.mrf.mxu0
  %480 = vmatprep.mubr.f32.mxu0 0.0
  %481 = vmatmul.mubr.f32.gmra.mxu0 %v389
  %v482 = vpop.f32.mrf.mxu0
  %v483 = vadd.f32 %v380, %v482
  %v484 = vpop.f32.mrf.mxu0
  %485 = vmatprep.mubr.f32.mxu0 0.0
  %486 = vmatmul.mubr.f32.gmra.mxu0 %v392
  %v487 = vpop.f32.mrf.mxu0
  %v488 = vadd.f32 %v380, %v487
  %v489 = vpop.f32.mrf.mxu0
  %490 = vmatprep.mubr.f32.mxu0 0.0
  %491 = vmatmul.mubr.f32.gmra.mxu0 %v395
  %v492 = vpop.f32.mrf.mxu0
  %v493 = vadd.f32 %v380, %v492
  %v494 = vpop.f32.mrf.mxu0
  %495 = vmatprep.mubr.f32.mxu0 0.0
  %496 = vmatmul.mubr.f32.gmra.mxu0 %v398
  %v497 = vpop.f32.mrf.mxu0
  %v498 = vadd.f32 %v380, %v497
  %v499 = vpop.f32.mrf.mxu0
  %500 = vmatprep.mubr.f32.mxu0 0.0
  %501 = vmatmul.mubr.f32.gmra.mxu0 %v401
  %v502 = vpop.f32.mrf.mxu0
  %v503 = vadd.f32 %v380, %v502
  %v504 = vpop.f32.mrf.mxu0
  %505 = vmatprep.mubr.f32.mxu0 0.0
  %506 = vmatmul.mubr.f32.gmra.mxu0 %v404
  %v507 = vpop.f32.mrf.mxu0
  %v508 = vadd.f32 %v380, %v507
  %v509 = vpop.f32.mrf.mxu0
  %510 = vdwg.mxu0
  %vm511 = vcmask 31744
  %v512 = vsel %vm511, %v473, -inf
  %513 = vmax.xlane.f32.xlu0 %v512
  %v514 = vpop.xlane.xlu0 %513
  %v515 = vsel %vm511, %v478, -inf
  %516 = vmax.xlane.f32.xlu0 %v515
  %v517 = vpop.xlane.xlu0 %516
  %v518 = vsel %vm511, %v483, -inf
  %519 = vmax.xlane.f32.xlu0 %v518
  %v520 = vpop.xlane.xlu0 %519
  %v521 = vsel %vm511, %v488, -inf
  %522 = vmax.xlane.f32.xlu0 %v521
  %v523 = vpop.xlane.xlu0 %522
  %v524 = vsel %vm511, %v493, -inf
  %525 = vmax.xlane.f32.xlu0 %v524
  %v526 = vpop.xlane.xlu0 %525
  %v527 = vsel %vm511, %v498, -inf
  %528 = vmax.xlane.f32.xlu0 %v527
  %v529 = vpop.xlane.xlu0 %528
  %v530 = vsel %vm511, %v503, -inf
  %531 = vmax.xlane.f32.xlu0 %v530
  %v532 = vpop.xlane.xlu0 %531
  %v533 = vsel %vm511, %v508, -inf
  %534 = vmax.xlane.f32.xlu0 %v533
  %v535 = vpop.xlane.xlu0 %534
  %v536 = vsub.f32 %v473, %v514
  %v537 = vsub.f32 %v478, %v517
  %v538 = vsub.f32 %v483, %v520
  %v539 = vsub.f32 %v488, %v523
  %v540 = vsub.f32 %v493, %v526
  %v541 = vsub.f32 %v498, %v529
  %v542 = vsub.f32 %v503, %v532
  %v543 = vsub.f32 %v508, %v535
  %v544 = vmul.f32 %v536, 1.442695
  %v545 = vpow.pop %v544
  %v546 = vmul.f32 %v537, 1.442695
  %v547 = vpow.pop %v546
  %v548 = vmul.f32 %v538, 1.442695
  %v549 = vpow.pop %v548
  %v550 = vmul.f32 %v539, 1.442695
  %v551 = vpow.pop %v550
  %v552 = vmul.f32 %v540, 1.442695
  %v553 = vpow.pop %v552
  %v554 = vmul.f32 %v541, 1.442695
  %v555 = vpow.pop %v554
  %v556 = vmul.f32 %v542, 1.442695
  %v557 = vpow.pop %v556
  %v558 = vmul.f32 %v543, 1.442695
  %v559 = vpow.pop %v558
  %v560 = vsel %vm511, %v545, 0.0
  %561 = vadd.xlane.f32.xlu0 %v560
  %v562 = vpop.xlane.xlu0 %561
  %v563 = vsel %vm511, %v547, 0.0
  %564 = vadd.xlane.f32.xlu0 %v563
  %v565 = vpop.xlane.xlu0 %564
  %v566 = vsel %vm511, %v549, 0.0
  %567 = vadd.xlane.f32.xlu0 %v566
  %v568 = vpop.xlane.xlu0 %567
  %v569 = vsel %vm511, %v551, 0.0
  %570 = vadd.xlane.f32.xlu0 %v569
  %v571 = vpop.xlane.xlu0 %570
  %v572 = vsel %vm511, %v553, 0.0
  %573 = vadd.xlane.f32.xlu0 %v572
  %v574 = vpop.xlane.xlu0 %573
  %v575 = vsel %vm511, %v555, 0.0
  %576 = vadd.xlane.f32.xlu0 %v575
  %v577 = vpop.xlane.xlu0 %576
  %v578 = vsel %vm511, %v557, 0.0
  %579 = vadd.xlane.f32.xlu0 %v578
  %v580 = vpop.xlane.xlu0 %579
  %v581 = vsel %vm511, %v559, 0.0
  %582 = vadd.xlane.f32.xlu0 %v581
  %v583 = vpop.xlane.xlu0 %582
  %v584 = vrcp.pop %v562
  %v585 = vrcp.pop %v565
  %v586 = vrcp.pop %v568
  %v587 = vrcp.pop %v571
  %v588 = vrcp.pop %v574
  %v589 = vrcp.pop %v577
  %v590 = vrcp.pop %v580
  %v591 = vrcp.pop %v583
  %v592 = vmul.f32 %v545, %v584
  %v593 = vmul.f32 %v547, %v585
  %v594 = vmul.f32 %v549, %v586
  %v595 = vmul.f32 %v551, %v587
  %v596 = vmul.f32 %v553, %v588
  %v597 = vmul.f32 %v555, %v589
  %v598 = vmul.f32 %v557, %v590
  %v599 = vmul.f32 %v559, %v591
  %v600 = vld [vmem:[%s7] sm:$0xff]
  %v601 = vld [vmem:[%s7 + $0x8] sm:$0xff]
  %v602 = vld [vmem:[%s7 + $0x10] sm:$0xff]
  %v603 = vld [vmem:[%s7 + $0x18] sm:$0xff]
  %v604 = vld [vmem:[%s7 + $0x20] sm:$0xff]
  %v605 = vld [vmem:[%s7 + $0x28] sm:$0xff]
  %v606 = vld [vmem:[%s7 + $0x30] sm:$0xff]
  %v607 = vld [vmem:[%s7 + $0x38] sm:$0xff]
  %609 = vset.pattern.permute.xlu0 0
  %610 = vperm.xlu0 %609, %v592
  %v611 = vpop.permute.xlu0 %610
  %614 = vset.pattern.permute.xlu0 0
  %615 = vperm.xlu0 %614, %v593
  %v616 = vpop.permute.xlu0 %615
  %619 = vset.pattern.permute.xlu0 0
  %620 = vperm.xlu0 %619, %v594
  %v621 = vpop.permute.xlu0 %620
  %624 = vset.pattern.permute.xlu0 0
  %625 = vperm.xlu0 %624, %v595
  %v626 = vpop.permute.xlu0 %625
  %629 = vset.pattern.permute.xlu0 0
  %630 = vperm.xlu0 %629, %v596
  %v631 = vpop.permute.xlu0 %630
  %634 = vset.pattern.permute.xlu0 0
  %635 = vperm.xlu0 %634, %v597
  %v636 = vpop.permute.xlu0 %635
  %639 = vset.pattern.permute.xlu0 0
  %640 = vperm.xlu0 %639, %v598
  %v641 = vpop.permute.xlu0 %640
  %644 = vset.pattern.permute.xlu0 0
  %645 = vperm.xlu0 %644, %v599
  %v646 = vpop.permute.xlu0 %645
  %v648 = vmul.f32 %v611, %v600
  %v649 = vmul.f32 %v616, %v601
  %v650 = vmul.f32 %v621, %v602
  %v651 = vmul.f32 %v626, %v603
  %v652 = vmul.f32 %v631, %v604
  %v653 = vmul.f32 %v636, %v605
  %v654 = vmul.f32 %v641, %v606
  %v655 = vmul.f32 %v646, %v607
  %s656 = scalar_lea.vmem %s7, 64
  %v657 = vld [vmem:[%s656] sm:$0xff]
  %v658 = vld [vmem:[%s656 + $0x8] sm:$0xff]
  %v659 = vld [vmem:[%s656 + $0x10] sm:$0xff]
  %v660 = vld [vmem:[%s656 + $0x18] sm:$0xff]
  %v661 = vld [vmem:[%s656 + $0x20] sm:$0xff]
  %v662 = vld [vmem:[%s656 + $0x28] sm:$0xff]
  %v663 = vld [vmem:[%s656 + $0x30] sm:$0xff]
  %v664 = vld [vmem:[%s656 + $0x38] sm:$0xff]
  %665 = vset.pattern.permute.xlu0 1
  %666 = vperm.xlu0 %665, %v592
  %v667 = vpop.permute.xlu0 %666
  %669 = vset.pattern.permute.xlu0 1
  %670 = vperm.xlu0 %669, %v593
  %v671 = vpop.permute.xlu0 %670
  %673 = vset.pattern.permute.xlu0 1
  %674 = vperm.xlu0 %673, %v594
  %v675 = vpop.permute.xlu0 %674
  %677 = vset.pattern.permute.xlu0 1
  %678 = vperm.xlu0 %677, %v595
  %v679 = vpop.permute.xlu0 %678
  %681 = vset.pattern.permute.xlu0 1
  %682 = vperm.xlu0 %681, %v596
  %v683 = vpop.permute.xlu0 %682
  %685 = vset.pattern.permute.xlu0 1
  %686 = vperm.xlu0 %685, %v597
  %v687 = vpop.permute.xlu0 %686
  %689 = vset.pattern.permute.xlu0 1
  %690 = vperm.xlu0 %689, %v598
  %v691 = vpop.permute.xlu0 %690
  %693 = vset.pattern.permute.xlu0 1
  %694 = vperm.xlu0 %693, %v599
  %v695 = vpop.permute.xlu0 %694
  %v697 = vmul.f32 %v667, %v657
  %v698 = vmul.f32 %v671, %v658
  %v699 = vmul.f32 %v675, %v659
  %v700 = vmul.f32 %v679, %v660
  %v701 = vmul.f32 %v683, %v661
  %v702 = vmul.f32 %v687, %v662
  %v703 = vmul.f32 %v691, %v663
  %v704 = vmul.f32 %v695, %v664
  %v705 = vadd.f32 %v648, %v697
  %v706 = vadd.f32 %v649, %v698
  %v707 = vadd.f32 %v650, %v699
  %v708 = vadd.f32 %v651, %v700
  %v709 = vadd.f32 %v652, %v701
  %v710 = vadd.f32 %v653, %v702
  %v711 = vadd.f32 %v654, %v703
  %v712 = vadd.f32 %v655, %v704
  %s713 = scalar_lea.vmem %s7, 128
  %v714 = vld [vmem:[%s713] sm:$0xff]
  %v715 = vld [vmem:[%s713 + $0x8] sm:$0xff]
  %v716 = vld [vmem:[%s713 + $0x10] sm:$0xff]
  %v717 = vld [vmem:[%s713 + $0x18] sm:$0xff]
  %v718 = vld [vmem:[%s713 + $0x20] sm:$0xff]
  %v719 = vld [vmem:[%s713 + $0x28] sm:$0xff]
  %v720 = vld [vmem:[%s713 + $0x30] sm:$0xff]
  %v721 = vld [vmem:[%s713 + $0x38] sm:$0xff]
  %722 = vset.pattern.permute.xlu0 2
  %723 = vperm.xlu0 %722, %v592
  %v724 = vpop.permute.xlu0 %723
  %726 = vset.pattern.permute.xlu0 2
  %727 = vperm.xlu0 %726, %v593
  %v728 = vpop.permute.xlu0 %727
  %730 = vset.pattern.permute.xlu0 2
  %731 = vperm.xlu0 %730, %v594
  %v732 = vpop.permute.xlu0 %731
  %734 = vset.pattern.permute.xlu0 2
  %735 = vperm.xlu0 %734, %v595
  %v736 = vpop.permute.xlu0 %735
  %738 = vset.pattern.permute.xlu0 2
  %739 = vperm.xlu0 %738, %v596
  %v740 = vpop.permute.xlu0 %739
  %742 = vset.pattern.permute.xlu0 2
  %743 = vperm.xlu0 %742, %v597
  %v744 = vpop.permute.xlu0 %743
  %746 = vset.pattern.permute.xlu0 2
  %747 = vperm.xlu0 %746, %v598
  %v748 = vpop.permute.xlu0 %747
  %750 = vset.pattern.permute.xlu0 2
  %751 = vperm.xlu0 %750, %v599
  %v752 = vpop.permute.xlu0 %751
  %v754 = vmul.f32 %v724, %v714
  %v755 = vmul.f32 %v728, %v715
  %v756 = vmul.f32 %v732, %v716
  %v757 = vmul.f32 %v736, %v717
  %v758 = vmul.f32 %v740, %v718
  %v759 = vmul.f32 %v744, %v719
  %v760 = vmul.f32 %v748, %v720
  %v761 = vmul.f32 %v752, %v721
  %v762 = vadd.f32 %v705, %v754
  %v763 = vadd.f32 %v706, %v755
  %v764 = vadd.f32 %v707, %v756
  %v765 = vadd.f32 %v708, %v757
  %v766 = vadd.f32 %v709, %v758
  %v767 = vadd.f32 %v710, %v759
  %v768 = vadd.f32 %v711, %v760
  %v769 = vadd.f32 %v712, %v761
  %s770 = scalar_lea.vmem %s7, 192
  %v771 = vld [vmem:[%s770] sm:$0xff]
  %v772 = vld [vmem:[%s770 + $0x8] sm:$0xff]
  %v773 = vld [vmem:[%s770 + $0x10] sm:$0xff]
  %v774 = vld [vmem:[%s770 + $0x18] sm:$0xff]
  %v775 = vld [vmem:[%s770 + $0x20] sm:$0xff]
  %v776 = vld [vmem:[%s770 + $0x28] sm:$0xff]
  %v777 = vld [vmem:[%s770 + $0x30] sm:$0xff]
  %v778 = vld [vmem:[%s770 + $0x38] sm:$0xff]
  %779 = vset.pattern.permute.xlu0 3
  %780 = vperm.xlu0 %779, %v592
  %v781 = vpop.permute.xlu0 %780
  %783 = vset.pattern.permute.xlu0 3
  %784 = vperm.xlu0 %783, %v593
  %v785 = vpop.permute.xlu0 %784
  %787 = vset.pattern.permute.xlu0 3
  %788 = vperm.xlu0 %787, %v594
  %v789 = vpop.permute.xlu0 %788
  %791 = vset.pattern.permute.xlu0 3
  %792 = vperm.xlu0 %791, %v595
  %v793 = vpop.permute.xlu0 %792
  %795 = vset.pattern.permute.xlu0 3
  %796 = vperm.xlu0 %795, %v596
  %v797 = vpop.permute.xlu0 %796
  %799 = vset.pattern.permute.xlu0 3
  %800 = vperm.xlu0 %799, %v597
  %v801 = vpop.permute.xlu0 %800
  %803 = vset.pattern.permute.xlu0 3
  %804 = vperm.xlu0 %803, %v598
  %v805 = vpop.permute.xlu0 %804
  %807 = vset.pattern.permute.xlu0 3
  %808 = vperm.xlu0 %807, %v599
  %v809 = vpop.permute.xlu0 %808
  %v811 = vmul.f32 %v781, %v771
  %v812 = vmul.f32 %v785, %v772
  %v813 = vmul.f32 %v789, %v773
  %v814 = vmul.f32 %v793, %v774
  %v815 = vmul.f32 %v797, %v775
  %v816 = vmul.f32 %v801, %v776
  %v817 = vmul.f32 %v805, %v777
  %v818 = vmul.f32 %v809, %v778
  %v819 = vadd.f32 %v762, %v811
  %v820 = vadd.f32 %v763, %v812
  %v821 = vadd.f32 %v764, %v813
  %v822 = vadd.f32 %v765, %v814
  %v823 = vadd.f32 %v766, %v815
  %v824 = vadd.f32 %v767, %v816
  %v825 = vadd.f32 %v768, %v817
  %v826 = vadd.f32 %v769, %v818
  %v827 = vld [vmem:[%s8] sm:$0xff]
  %v828 = vld [vmem:[%s8 + $0x8] sm:$0xff]
  %v830 = vsel %vm317, %v309, 0
  %v833 = vsel %vm317, %v310, 0
  %v836 = vsel %vm317, %v311, 0
  %v839 = vsel %vm317, %v312, 0
  %v842 = vsel %vm317, %v313, 0
  %v845 = vsel %vm317, %v314, 0
  %v848 = vsel %vm317, %v315, 0
  %v851 = vsel %vm317, %v316, 0
  %853 = vmatprep.subr.mxu0 0.0
  %854 = vmatpush1.msra.mxu0 0.0
  %855 = vmatprep.subr.mxu0 0.0
  %856 = vmatpush1.msra.mxu0 0.0
  %857 = vmatprep.subr.mxu0 0.0
  %858 = vmatpush1.msra.mxu0 0.0
  %859 = vmatprep.subr.mxu0 0.0
  %860 = vmatpush1.msra.mxu0 0.0
  %861 = vmatprep.subr.mxu0 0.0
  %862 = vmatpush1.msra.mxu0 0.0
  %863 = vmatprep.subr.mxu0 0.0
  %864 = vmatpush1.msra.mxu0 0.0
  %865 = vmatprep.subr.mxu0 0.0
  %866 = vmatpush1.msra.mxu0 0.0
  %867 = vmatprep.subr.mxu0 0.0
  %868 = vmatpush1.msra.mxu0 0.0
  %869 = vmatprep.subr.mxu0 0.0
  %870 = vmatpush1.msra.mxu0 0.0
  %871 = vmatprep.subr.mxu0 0.0
  %872 = vmatpush1.msra.mxu0 0.0
  %873 = vmatprep.subr.mxu0 0.0
  %874 = vmatpush1.msra.mxu0 0.0
  %875 = vmatprep.subr.mxu0 0.0
  %876 = vmatpush1.msra.mxu0 0.0
  %877 = vmatprep.subr.mxu0 0.0
  %878 = vmatpush1.msra.mxu0 0.0
  %879 = vmatprep.subr.mxu0 0.0
  %880 = vmatpush1.msra.mxu0 0.0
  %881 = vmatprep.subr.mxu0 0.0
  %882 = vmatpush1.msra.mxu0 %v828
  %883 = vmatprep.subr.mxu0 0.0
  %884 = vmatpush1.msra.mxu0 %v827
  %885 = vmatprep.subr.mxu0 0.0
  %886 = vmatpush2.msra.mxu0 0.0
  %887 = vmatprep.subr.mxu0 0.0
  %888 = vmatpush2.msra.mxu0 0.0
  %889 = vmatprep.subr.mxu0 0.0
  %890 = vmatpush2.msra.mxu0 0.0
  %891 = vmatprep.subr.mxu0 0.0
  %892 = vmatpush2.msra.mxu0 0.0
  %893 = vmatprep.subr.mxu0 0.0
  %894 = vmatpush2.msra.mxu0 0.0
  %895 = vmatprep.subr.mxu0 0.0
  %896 = vmatpush2.msra.mxu0 0.0
  %897 = vmatprep.subr.mxu0 0.0
  %898 = vmatpush2.msra.mxu0 0.0
  %899 = vmatprep.subr.mxu0 0.0
  %900 = vmatpush2.msra.mxu0 0.0
  %901 = vmatprep.subr.mxu0 0.0
  %902 = vmatpush2.msra.mxu0 0.0
  %903 = vmatprep.subr.mxu0 0.0
  %904 = vmatpush2.msra.mxu0 0.0
  %905 = vmatprep.subr.mxu0 0.0
  %906 = vmatpush2.msra.mxu0 0.0
  %907 = vmatprep.subr.mxu0 0.0
  %908 = vmatpush2.msra.mxu0 0.0
  %909 = vmatprep.subr.mxu0 0.0
  %910 = vmatpush2.msra.mxu0 0.0
  %911 = vmatprep.subr.mxu0 0.0
  %912 = vmatpush2.msra.mxu0 0.0
  %913 = vmatprep.subr.mxu0 0.0
  %914 = vmatpush2.msra.mxu0 0.0
  %915 = vmatprep.subr.mxu0 0.0
  %916 = vmatpush2.msra.mxu0 0.0
  %917 = vmatprep.mubr.f32.mxu0 0.0
  %918 = vmatmul.mubr.f32.gmra.mxu0 %v830
  %v919 = vpop.f32.mrf.mxu0
  %v920 = vadd.f32 0.0, %v919
  %v921 = vpop.f32.mrf.mxu0
  %922 = vmatprep.mubr.f32.mxu0 0.0
  %923 = vmatmul.mubr.f32.gmra.mxu0 %v833
  %v924 = vpop.f32.mrf.mxu0
  %v925 = vadd.f32 0.0, %v924
  %v926 = vpop.f32.mrf.mxu0
  %927 = vmatprep.mubr.f32.mxu0 0.0
  %928 = vmatmul.mubr.f32.gmra.mxu0 %v836
  %v929 = vpop.f32.mrf.mxu0
  %v930 = vadd.f32 0.0, %v929
  %v931 = vpop.f32.mrf.mxu0
  %932 = vmatprep.mubr.f32.mxu0 0.0
  %933 = vmatmul.mubr.f32.gmra.mxu0 %v839
  %v934 = vpop.f32.mrf.mxu0
  %v935 = vadd.f32 0.0, %v934
  %v936 = vpop.f32.mrf.mxu0
  %937 = vmatprep.mubr.f32.mxu0 0.0
  %938 = vmatmul.mubr.f32.gmra.mxu0 %v842
  %v939 = vpop.f32.mrf.mxu0
  %v940 = vadd.f32 0.0, %v939
  %v941 = vpop.f32.mrf.mxu0
  %942 = vmatprep.mubr.f32.mxu0 0.0
  %943 = vmatmul.mubr.f32.gmra.mxu0 %v845
  %v944 = vpop.f32.mrf.mxu0
  %v945 = vadd.f32 0.0, %v944
  %v946 = vpop.f32.mrf.mxu0
  %947 = vmatprep.mubr.f32.mxu0 0.0
  %948 = vmatmul.mubr.f32.gmra.mxu0 %v848
  %v949 = vpop.f32.mrf.mxu0
  %v950 = vadd.f32 0.0, %v949
  %v951 = vpop.f32.mrf.mxu0
  %952 = vmatprep.mubr.f32.mxu0 0.0
  %953 = vmatmul.mubr.f32.gmra.mxu0 %v851
  %v954 = vpop.f32.mrf.mxu0
  %v955 = vadd.f32 0.0, %v954
  %v956 = vpop.f32.mrf.mxu0
  %957 = vdwg.mxu0
  %v958 = vmul.f32 %v920, %v819
  %v959 = vmul.f32 %v925, %v820
  %v960 = vmul.f32 %v930, %v821
  %v961 = vmul.f32 %v935, %v822
  %v962 = vmul.f32 %v940, %v823
  %v963 = vmul.f32 %v945, %v824
  %v964 = vmul.f32 %v950, %v825
  %v965 = vmul.f32 %v955, %v826
  %974 = vrot.lane.b32.xlu0 %v958, 119
  %v975 = vpop.permute.xlu0 %974
  %976 = vrot.lane.b32.xlu0 %v959, 119
  %v977 = vpop.permute.xlu0 %976
  %978 = vrot.lane.b32.xlu0 %v960, 119
  %v979 = vpop.permute.xlu0 %978
  %980 = vrot.lane.b32.xlu0 %v961, 119
  %v981 = vpop.permute.xlu0 %980
  %982 = vrot.lane.b32.xlu0 %v962, 119
  %v983 = vpop.permute.xlu0 %982
  %984 = vrot.lane.b32.xlu0 %v963, 119
  %v985 = vpop.permute.xlu0 %984
  %986 = vrot.lane.b32.xlu0 %v964, 119
  %v987 = vpop.permute.xlu0 %986
  %988 = vrot.lane.b32.xlu0 %v965, 119
  %v989 = vpop.permute.xlu0 %988
  %v998 = vsub.f32 %v958, %v975
  %v999 = vsub.f32 %v959, %v977
  %v1000 = vsub.f32 %v960, %v979
  %v1001 = vsub.f32 %v961, %v981
  %v1002 = vsub.f32 %v962, %v983
  %v1003 = vsub.f32 %v963, %v985
  %v1004 = vsub.f32 %v964, %v987
  %v1005 = vsub.f32 %v965, %v989
  %1014 = vrot.lane.b32.xlu0 %v819, 119
  %v1015 = vpop.permute.xlu0 %1014
  %1016 = vrot.lane.b32.xlu0 %v820, 119
  %v1017 = vpop.permute.xlu0 %1016
  %1018 = vrot.lane.b32.xlu0 %v821, 119
  %v1019 = vpop.permute.xlu0 %1018
  %1020 = vrot.lane.b32.xlu0 %v822, 119
  %v1021 = vpop.permute.xlu0 %1020
  %1022 = vrot.lane.b32.xlu0 %v823, 119
  %v1023 = vpop.permute.xlu0 %1022
  %1024 = vrot.lane.b32.xlu0 %v824, 119
  %v1025 = vpop.permute.xlu0 %1024
  %1026 = vrot.lane.b32.xlu0 %v825, 119
  %v1027 = vpop.permute.xlu0 %1026
  %1028 = vrot.lane.b32.xlu0 %v826, 119
  %v1029 = vpop.permute.xlu0 %1028
  %v1038 = vmul.f32 %v920, %v1015
  %v1039 = vmul.f32 %v925, %v1017
  %v1040 = vmul.f32 %v930, %v1019
  %v1041 = vmul.f32 %v935, %v1021
  %v1042 = vmul.f32 %v940, %v1023
  %v1043 = vmul.f32 %v945, %v1025
  %v1044 = vmul.f32 %v950, %v1027
  %v1045 = vmul.f32 %v955, %v1029
  %1046 = vrot.lane.b32.xlu0 %v819, 9
  %v1047 = vpop.permute.xlu0 %1046
  %1048 = vrot.lane.b32.xlu0 %v820, 9
  %v1049 = vpop.permute.xlu0 %1048
  %1050 = vrot.lane.b32.xlu0 %v821, 9
  %v1051 = vpop.permute.xlu0 %1050
  %1052 = vrot.lane.b32.xlu0 %v822, 9
  %v1053 = vpop.permute.xlu0 %1052
  %1054 = vrot.lane.b32.xlu0 %v823, 9
  %v1055 = vpop.permute.xlu0 %1054
  %1056 = vrot.lane.b32.xlu0 %v824, 9
  %v1057 = vpop.permute.xlu0 %1056
  %1058 = vrot.lane.b32.xlu0 %v825, 9
  %v1059 = vpop.permute.xlu0 %1058
  %1060 = vrot.lane.b32.xlu0 %v826, 9
  %v1061 = vpop.permute.xlu0 %1060
  %v1070 = vmul.f32 %v920, %v1047
  %v1071 = vmul.f32 %v925, %v1049
  %v1072 = vmul.f32 %v930, %v1051
  %v1073 = vmul.f32 %v935, %v1053
  %v1074 = vmul.f32 %v940, %v1055
  %v1075 = vmul.f32 %v945, %v1057
  %v1076 = vmul.f32 %v950, %v1059
  %v1077 = vmul.f32 %v955, %v1061
  %1086 = vrot.lane.b32.xlu0 %v1070, 119
  %v1087 = vpop.permute.xlu0 %1086
  %1088 = vrot.lane.b32.xlu0 %v1071, 119
  %v1089 = vpop.permute.xlu0 %1088
  %1090 = vrot.lane.b32.xlu0 %v1072, 119
  %v1091 = vpop.permute.xlu0 %1090
  %1092 = vrot.lane.b32.xlu0 %v1073, 119
  %v1093 = vpop.permute.xlu0 %1092
  %1094 = vrot.lane.b32.xlu0 %v1074, 119
  %v1095 = vpop.permute.xlu0 %1094
  %1096 = vrot.lane.b32.xlu0 %v1075, 119
  %v1097 = vpop.permute.xlu0 %1096
  %1098 = vrot.lane.b32.xlu0 %v1076, 119
  %v1099 = vpop.permute.xlu0 %1098
  %1100 = vrot.lane.b32.xlu0 %v1077, 119
  %v1101 = vpop.permute.xlu0 %1100
  %v1110 = vadd.f32 %v1038, %v1087
  %v1111 = vadd.f32 %v1039, %v1089
  %v1112 = vadd.f32 %v1040, %v1091
  %v1113 = vadd.f32 %v1041, %v1093
  %v1114 = vadd.f32 %v1042, %v1095
  %v1115 = vadd.f32 %v1043, %v1097
  %v1116 = vadd.f32 %v1044, %v1099
  %v1117 = vadd.f32 %v1045, %v1101
  %1126 = vrot.lane.b32.xlu0 %v1110, 9
  %v1127 = vpop.permute.xlu0 %1126
  %1128 = vrot.lane.b32.xlu0 %v1111, 9
  %v1129 = vpop.permute.xlu0 %1128
  %1130 = vrot.lane.b32.xlu0 %v1112, 9
  %v1131 = vpop.permute.xlu0 %1130
  %1132 = vrot.lane.b32.xlu0 %v1113, 9
  %v1133 = vpop.permute.xlu0 %1132
  %1134 = vrot.lane.b32.xlu0 %v1114, 9
  %v1135 = vpop.permute.xlu0 %1134
  %1136 = vrot.lane.b32.xlu0 %v1115, 9
  %v1137 = vpop.permute.xlu0 %1136
  %1138 = vrot.lane.b32.xlu0 %v1116, 9
  %v1139 = vpop.permute.xlu0 %1138
  %1140 = vrot.lane.b32.xlu0 %v1117, 9
  %v1141 = vpop.permute.xlu0 %1140
  %vm1150 = vcmask 72704
  %v1151 = vsel %vm1150, %v998, %v1127
  %v1152 = vsel %vm1150, %v999, %v1129
  %v1153 = vsel %vm1150, %v1000, %v1131
  %v1154 = vsel %vm1150, %v1001, %v1133
  %v1155 = vsel %vm1150, %v1002, %v1135
  %v1156 = vsel %vm1150, %v1003, %v1137
  %v1157 = vsel %vm1150, %v1004, %v1139
  %v1158 = vsel %vm1150, %v1005, %v1141
  %v1159 = vld [vmem:[%s9] sm:$0xff]
  %v1160 = vld [vmem:[%s9 + $0x8] sm:$0xff]
  %v1161 = vld [vmem:[%s9 + $0x10] sm:$0x3]
  %vm1162 = vcmask 146432
  %v1164 = vsel %vm1162, %v1151, 0
  %v1167 = vsel %vm1162, %v1152, 0
  %v1170 = vsel %vm1162, %v1153, 0
  %v1173 = vsel %vm1162, %v1154, 0
  %v1176 = vsel %vm1162, %v1155, 0
  %v1179 = vsel %vm1162, %v1156, 0
  %v1182 = vsel %vm1162, %v1157, 0
  %v1185 = vsel %vm1162, %v1158, 0
  %vm1187 = vcmask 1041408
  %v1189 = vsel %vm1187, %v1161, 0
  %1191 = vmatprep.subr.mxu0 0.0
  %1192 = vmatpush1.msra.mxu0 0.0
  %1193 = vmatprep.subr.mxu0 0.0
  %1194 = vmatpush1.msra.mxu0 0.0
  %1195 = vmatprep.subr.mxu0 0.0
  %1196 = vmatpush1.msra.mxu0 0.0
  %1197 = vmatprep.subr.mxu0 0.0
  %1198 = vmatpush1.msra.mxu0 0.0
  %1199 = vmatprep.subr.mxu0 0.0
  %1200 = vmatpush1.msra.mxu0 0.0
  %1201 = vmatprep.subr.mxu0 0.0
  %1202 = vmatpush1.msra.mxu0 0.0
  %1203 = vmatprep.subr.mxu0 0.0
  %1204 = vmatpush1.msra.mxu0 0.0
  %1205 = vmatprep.subr.mxu0 0.0
  %1206 = vmatpush1.msra.mxu0 0.0
  %1207 = vmatprep.subr.mxu0 0.0
  %1208 = vmatpush1.msra.mxu0 0.0
  %1209 = vmatprep.subr.mxu0 0.0
  %1210 = vmatpush1.msra.mxu0 0.0
  %1211 = vmatprep.subr.mxu0 0.0
  %1212 = vmatpush1.msra.mxu0 0.0
  %1213 = vmatprep.subr.mxu0 0.0
  %1214 = vmatpush1.msra.mxu0 0.0
  %1215 = vmatprep.subr.mxu0 0.0
  %1216 = vmatpush1.msra.mxu0 0.0
  %1217 = vmatprep.subr.mxu0 0.0
  %1218 = vmatpush1.msra.mxu0 %v1189
  %1219 = vmatprep.subr.mxu0 0.0
  %1220 = vmatpush1.msra.mxu0 %v1160
  %1221 = vmatprep.subr.mxu0 0.0
  %1222 = vmatpush1.msra.mxu0 %v1159
  %1223 = vmatprep.subr.mxu0 0.0
  %1224 = vmatpush2.msra.mxu0 0.0
  %1225 = vmatprep.subr.mxu0 0.0
  %1226 = vmatpush2.msra.mxu0 0.0
  %1227 = vmatprep.subr.mxu0 0.0
  %1228 = vmatpush2.msra.mxu0 0.0
  %1229 = vmatprep.subr.mxu0 0.0
  %1230 = vmatpush2.msra.mxu0 0.0
  %1231 = vmatprep.subr.mxu0 0.0
  %1232 = vmatpush2.msra.mxu0 0.0
  %1233 = vmatprep.subr.mxu0 0.0
  %1234 = vmatpush2.msra.mxu0 0.0
  %1235 = vmatprep.subr.mxu0 0.0
  %1236 = vmatpush2.msra.mxu0 0.0
  %1237 = vmatprep.subr.mxu0 0.0
  %1238 = vmatpush2.msra.mxu0 0.0
  %1239 = vmatprep.subr.mxu0 0.0
  %1240 = vmatpush2.msra.mxu0 0.0
  %1241 = vmatprep.subr.mxu0 0.0
  %1242 = vmatpush2.msra.mxu0 0.0
  %1243 = vmatprep.subr.mxu0 0.0
  %1244 = vmatpush2.msra.mxu0 0.0
  %1245 = vmatprep.subr.mxu0 0.0
  %1246 = vmatpush2.msra.mxu0 0.0
  %1247 = vmatprep.subr.mxu0 0.0
  %1248 = vmatpush2.msra.mxu0 0.0
  %1249 = vmatprep.subr.mxu0 0.0
  %1250 = vmatpush2.msra.mxu0 0.0
  %1251 = vmatprep.subr.mxu0 0.0
  %1252 = vmatpush2.msra.mxu0 0.0
  %1253 = vmatprep.subr.mxu0 0.0
  %1254 = vmatpush2.msra.mxu0 0.0
  %1255 = vmatprep.mubr.f32.mxu0 0.0
  %1256 = vmatmul.mubr.f32.gmra.mxu0 %v1164
  %v1257 = vpop.f32.mrf.mxu0
  %v1258 = vadd.f32 0.0, %v1257
  %v1259 = vpop.f32.mrf.mxu0
  %1260 = vmatprep.mubr.f32.mxu0 0.0
  %1261 = vmatmul.mubr.f32.gmra.mxu0 %v1167
  %v1262 = vpop.f32.mrf.mxu0
  %v1263 = vadd.f32 0.0, %v1262
  %v1264 = vpop.f32.mrf.mxu0
  %1265 = vmatprep.mubr.f32.mxu0 0.0
  %1266 = vmatmul.mubr.f32.gmra.mxu0 %v1170
  %v1267 = vpop.f32.mrf.mxu0
  %v1268 = vadd.f32 0.0, %v1267
  %v1269 = vpop.f32.mrf.mxu0
  %1270 = vmatprep.mubr.f32.mxu0 0.0
  %1271 = vmatmul.mubr.f32.gmra.mxu0 %v1173
  %v1272 = vpop.f32.mrf.mxu0
  %v1273 = vadd.f32 0.0, %v1272
  %v1274 = vpop.f32.mrf.mxu0
  %1275 = vmatprep.mubr.f32.mxu0 0.0
  %1276 = vmatmul.mubr.f32.gmra.mxu0 %v1176
  %v1277 = vpop.f32.mrf.mxu0
  %v1278 = vadd.f32 0.0, %v1277
  %v1279 = vpop.f32.mrf.mxu0
  %1280 = vmatprep.mubr.f32.mxu0 0.0
  %1281 = vmatmul.mubr.f32.gmra.mxu0 %v1179
  %v1282 = vpop.f32.mrf.mxu0
  %v1283 = vadd.f32 0.0, %v1282
  %v1284 = vpop.f32.mrf.mxu0
  %1285 = vmatprep.mubr.f32.mxu0 0.0
  %1286 = vmatmul.mubr.f32.gmra.mxu0 %v1182
  %v1287 = vpop.f32.mrf.mxu0
  %v1288 = vadd.f32 0.0, %v1287
  %v1289 = vpop.f32.mrf.mxu0
  %1290 = vmatprep.mubr.f32.mxu0 0.0
  %1291 = vmatmul.mubr.f32.gmra.mxu0 %v1185
  %v1292 = vpop.f32.mrf.mxu0
  %v1293 = vadd.f32 0.0, %v1292
  %v1294 = vpop.f32.mrf.mxu0
  %1295 = vdwg.mxu0
  %v1296 = vmax.f32 %v1258, 0.0
  %v1297 = vmax.f32 %v1263, 0.0
  %v1298 = vmax.f32 %v1268, 0.0
  %v1299 = vmax.f32 %v1273, 0.0
  %v1300 = vmax.f32 %v1278, 0.0
  %v1301 = vmax.f32 %v1283, 0.0
  %v1302 = vmax.f32 %v1288, 0.0
  %v1303 = vmax.f32 %v1293, 0.0
  %v1304 = vld [vmem:[%s2] sm:$0xff]
  %v1305 = vld [vmem:[%s2 + $0x8] sm:$0xff]
  %v1306 = vld [vmem:[%s2 + $0x10] sm:$0xff]
  %v1307 = vld [vmem:[%s2 + $0x18] sm:$0xff]
  %v1308 = vld [vmem:[%s2 + $0x20] sm:$0xff]
  %v1309 = vld [vmem:[%s2 + $0x28] sm:$0xff]
  %v1310 = vld [vmem:[%s2 + $0x30] sm:$0xff]
  %v1311 = vld [vmem:[%s2 + $0x38] sm:$0xff]
  %1312 = vset.pattern.permute.xlu0 3
  %1313 = vperm.xlu0 %1312, %v43
  %v1314 = vpop.permute.xlu0 %1313
  %1316 = vset.pattern.permute.xlu0 3
  %1317 = vperm.xlu0 %1316, %v44
  %v1318 = vpop.permute.xlu0 %1317
  %1320 = vset.pattern.permute.xlu0 3
  %1321 = vperm.xlu0 %1320, %v45
  %v1322 = vpop.permute.xlu0 %1321
  %1324 = vset.pattern.permute.xlu0 3
  %1325 = vperm.xlu0 %1324, %v46
  %v1326 = vpop.permute.xlu0 %1325
  %1328 = vset.pattern.permute.xlu0 3
  %1329 = vperm.xlu0 %1328, %v47
  %v1330 = vpop.permute.xlu0 %1329
  %1332 = vset.pattern.permute.xlu0 3
  %1333 = vperm.xlu0 %1332, %v48
  %v1334 = vpop.permute.xlu0 %1333
  %1336 = vset.pattern.permute.xlu0 3
  %1337 = vperm.xlu0 %1336, %v49
  %v1338 = vpop.permute.xlu0 %1337
  %1340 = vset.pattern.permute.xlu0 3
  %1341 = vperm.xlu0 %1340, %v50
  %v1342 = vpop.permute.xlu0 %1341
  %v1345 = vsel %vm99, %v1304, 0
  %v1348 = vsel %vm99, %v1305, 0
  %v1351 = vsel %vm99, %v1306, 0
  %v1354 = vsel %vm99, %v1307, 0
  %v1357 = vsel %vm99, %v1308, 0
  %v1360 = vsel %vm99, %v1309, 0
  %v1363 = vsel %vm99, %v1310, 0
  %v1366 = vsel %vm99, %v1311, 0
  %1368 = vmatprep.subr.mxu0 0.0
  %1369 = vmatpush1.msra.mxu0 0.0
  %1370 = vmatprep.subr.mxu0 0.0
  %1371 = vmatpush1.msra.mxu0 0.0
  %1372 = vmatprep.subr.mxu0 0.0
  %1373 = vmatpush1.msra.mxu0 0.0
  %1374 = vmatprep.subr.mxu0 0.0
  %1375 = vmatpush1.msra.mxu0 0.0
  %1376 = vmatprep.subr.mxu0 0.0
  %1377 = vmatpush1.msra.mxu0 0.0
  %1378 = vmatprep.subr.mxu0 0.0
  %1379 = vmatpush1.msra.mxu0 0.0
  %1380 = vmatprep.subr.mxu0 0.0
  %1381 = vmatpush1.msra.mxu0 0.0
  %1382 = vmatprep.subr.mxu0 0.0
  %1383 = vmatpush1.msra.mxu0 0.0
  %1384 = vmatprep.subr.mxu0 0.0
  %1385 = vmatpush1.msra.mxu0 %v1303
  %1386 = vmatprep.subr.mxu0 0.0
  %1387 = vmatpush1.msra.mxu0 %v1302
  %1388 = vmatprep.subr.mxu0 0.0
  %1389 = vmatpush1.msra.mxu0 %v1301
  %1390 = vmatprep.subr.mxu0 0.0
  %1391 = vmatpush1.msra.mxu0 %v1300
  %1392 = vmatprep.subr.mxu0 0.0
  %1393 = vmatpush1.msra.mxu0 %v1299
  %1394 = vmatprep.subr.mxu0 0.0
  %1395 = vmatpush1.msra.mxu0 %v1298
  %1396 = vmatprep.subr.mxu0 0.0
  %1397 = vmatpush1.msra.mxu0 %v1297
  %1398 = vmatprep.subr.mxu0 0.0
  %1399 = vmatpush1.msra.mxu0 %v1296
  %1400 = vmatprep.subr.mxu0 0.0
  %1401 = vmatpush2.msra.mxu0 0.0
  %1402 = vmatprep.subr.mxu0 0.0
  %1403 = vmatpush2.msra.mxu0 0.0
  %1404 = vmatprep.subr.mxu0 0.0
  %1405 = vmatpush2.msra.mxu0 0.0
  %1406 = vmatprep.subr.mxu0 0.0
  %1407 = vmatpush2.msra.mxu0 0.0
  %1408 = vmatprep.subr.mxu0 0.0
  %1409 = vmatpush2.msra.mxu0 0.0
  %1410 = vmatprep.subr.mxu0 0.0
  %1411 = vmatpush2.msra.mxu0 0.0
  %1412 = vmatprep.subr.mxu0 0.0
  %1413 = vmatpush2.msra.mxu0 0.0
  %1414 = vmatprep.subr.mxu0 0.0
  %1415 = vmatpush2.msra.mxu0 0.0
  %1416 = vmatprep.subr.mxu0 0.0
  %1417 = vmatpush2.msra.mxu0 0.0
  %1418 = vmatprep.subr.mxu0 0.0
  %1419 = vmatpush2.msra.mxu0 0.0
  %1420 = vmatprep.subr.mxu0 0.0
  %1421 = vmatpush2.msra.mxu0 0.0
  %1422 = vmatprep.subr.mxu0 0.0
  %1423 = vmatpush2.msra.mxu0 0.0
  %1424 = vmatprep.subr.mxu0 0.0
  %1425 = vmatpush2.msra.mxu0 0.0
  %1426 = vmatprep.subr.mxu0 0.0
  %1427 = vmatpush2.msra.mxu0 0.0
  %1428 = vmatprep.subr.mxu0 0.0
  %1429 = vmatpush2.msra.mxu0 0.0
  %1430 = vmatprep.subr.mxu0 0.0
  %1431 = vmatpush2.msra.mxu0 0.0
  %1432 = vmatprep.mubr.f32.mxu0 0.0
  %1433 = vmatmul.mubr.f32.gmra.mxu0 %v1345
  %v1434 = vpop.f32.mrf.mxu0
  %v1435 = vadd.f32 %v1314, %v1434
  %v1436 = vpop.f32.mrf.mxu0
  %1437 = vmatprep.mubr.f32.mxu0 0.0
  %1438 = vmatmul.mubr.f32.gmra.mxu0 %v1348
  %v1439 = vpop.f32.mrf.mxu0
  %v1440 = vadd.f32 %v1318, %v1439
  %v1441 = vpop.f32.mrf.mxu0
  %1442 = vmatprep.mubr.f32.mxu0 0.0
  %1443 = vmatmul.mubr.f32.gmra.mxu0 %v1351
  %v1444 = vpop.f32.mrf.mxu0
  %v1445 = vadd.f32 %v1322, %v1444
  %v1446 = vpop.f32.mrf.mxu0
  %1447 = vmatprep.mubr.f32.mxu0 0.0
  %1448 = vmatmul.mubr.f32.gmra.mxu0 %v1354
  %v1449 = vpop.f32.mrf.mxu0
  %v1450 = vadd.f32 %v1326, %v1449
  %v1451 = vpop.f32.mrf.mxu0
  %1452 = vmatprep.mubr.f32.mxu0 0.0
  %1453 = vmatmul.mubr.f32.gmra.mxu0 %v1357
  %v1454 = vpop.f32.mrf.mxu0
  %v1455 = vadd.f32 %v1330, %v1454
  %v1456 = vpop.f32.mrf.mxu0
  %1457 = vmatprep.mubr.f32.mxu0 0.0
  %1458 = vmatmul.mubr.f32.gmra.mxu0 %v1360
  %v1459 = vpop.f32.mrf.mxu0
  %v1460 = vadd.f32 %v1334, %v1459
  %v1461 = vpop.f32.mrf.mxu0
  %1462 = vmatprep.mubr.f32.mxu0 0.0
  %1463 = vmatmul.mubr.f32.gmra.mxu0 %v1363
  %v1464 = vpop.f32.mrf.mxu0
  %v1465 = vadd.f32 %v1338, %v1464
  %v1466 = vpop.f32.mrf.mxu0
  %1467 = vmatprep.mubr.f32.mxu0 0.0
  %1468 = vmatmul.mubr.f32.gmra.mxu0 %v1366
  %v1469 = vpop.f32.mrf.mxu0
  %v1470 = vadd.f32 %v1342, %v1469
  %v1471 = vpop.f32.mrf.mxu0
  %1472 = vdwg.mxu0
  %v1473 = vmax.f32 %v1435, 0.0
  %v1474 = vmax.f32 %v1440, 0.0
  %v1475 = vmax.f32 %v1445, 0.0
  %v1476 = vmax.f32 %v1450, 0.0
  %v1477 = vmax.f32 %v1455, 0.0
  %v1478 = vmax.f32 %v1460, 0.0
  %v1479 = vmax.f32 %v1465, 0.0
  %v1480 = vmax.f32 %v1470, 0.0
  %1481 = vset.pattern.permute.xlu0 4
  %1482 = vperm.xlu0 %1481, %v43
  %v1483 = vpop.permute.xlu0 %1482
  %1485 = vset.pattern.permute.xlu0 4
  %1486 = vperm.xlu0 %1485, %v44
  %v1487 = vpop.permute.xlu0 %1486
  %1489 = vset.pattern.permute.xlu0 4
  %1490 = vperm.xlu0 %1489, %v45
  %v1491 = vpop.permute.xlu0 %1490
  %1493 = vset.pattern.permute.xlu0 4
  %1494 = vperm.xlu0 %1493, %v46
  %v1495 = vpop.permute.xlu0 %1494
  %1497 = vset.pattern.permute.xlu0 4
  %1498 = vperm.xlu0 %1497, %v47
  %v1499 = vpop.permute.xlu0 %1498
  %1501 = vset.pattern.permute.xlu0 4
  %1502 = vperm.xlu0 %1501, %v48
  %v1503 = vpop.permute.xlu0 %1502
  %1505 = vset.pattern.permute.xlu0 4
  %1506 = vperm.xlu0 %1505, %v49
  %v1507 = vpop.permute.xlu0 %1506
  %1509 = vset.pattern.permute.xlu0 4
  %1510 = vperm.xlu0 %1509, %v50
  %v1511 = vpop.permute.xlu0 %1510
  %v1513 = vmul.f32 %v1473, %v1483
  %v1514 = vmul.f32 %v1474, %v1487
  %v1515 = vmul.f32 %v1475, %v1491
  %v1516 = vmul.f32 %v1476, %v1495
  %v1517 = vmul.f32 %v1477, %v1499
  %v1518 = vmul.f32 %v1478, %v1503
  %v1519 = vmul.f32 %v1479, %v1507
  %v1520 = vmul.f32 %v1480, %v1511
  %v1521 = vadd.f32 %v35, %v1513
  %v1522 = vadd.f32 %v36, %v1514
  %v1523 = vadd.f32 %v37, %v1515
  %v1524 = vadd.f32 %v38, %v1516
  %v1525 = vadd.f32 %v39, %v1517
  %v1526 = vadd.f32 %v40, %v1518
  %v1527 = vadd.f32 %v41, %v1519
  %v1528 = vadd.f32 %v42, %v1520
  %1529 = vset.pattern.permute.xlu0 5
  %1530 = vperm.xlu0 %1529, %v43
  %v1531 = vpop.permute.xlu0 %1530
  %1533 = vset.pattern.permute.xlu0 5
  %1534 = vperm.xlu0 %1533, %v44
  %v1535 = vpop.permute.xlu0 %1534
  %1537 = vset.pattern.permute.xlu0 5
  %1538 = vperm.xlu0 %1537, %v45
  %v1539 = vpop.permute.xlu0 %1538
  %1541 = vset.pattern.permute.xlu0 5
  %1542 = vperm.xlu0 %1541, %v46
  %v1543 = vpop.permute.xlu0 %1542
  %1545 = vset.pattern.permute.xlu0 5
  %1546 = vperm.xlu0 %1545, %v47
  %v1547 = vpop.permute.xlu0 %1546
  %1549 = vset.pattern.permute.xlu0 5
  %1550 = vperm.xlu0 %1549, %v48
  %v1551 = vpop.permute.xlu0 %1550
  %1553 = vset.pattern.permute.xlu0 5
  %1554 = vperm.xlu0 %1553, %v49
  %v1555 = vpop.permute.xlu0 %1554
  %1557 = vset.pattern.permute.xlu0 5
  %1558 = vperm.xlu0 %1557, %v50
  %v1559 = vpop.permute.xlu0 %1558
  %v1561 = vadd.f32 %v1521, %v1531
  %v1562 = vadd.f32 %v1522, %v1535
  %v1563 = vadd.f32 %v1523, %v1539
  %v1564 = vadd.f32 %v1524, %v1543
  %v1565 = vadd.f32 %v1525, %v1547
  %v1566 = vadd.f32 %v1526, %v1551
  %v1567 = vadd.f32 %v1527, %v1555
  %v1568 = vadd.f32 %v1528, %v1559
  %1569 = vst.msk [vmem:[%s10] sm:$0xff] %vm317, %v1561
  %1570 = vst.msk [vmem:[%s10 + $0x8] sm:$0xff] %vm317, %v1562
  %1571 = vst.msk [vmem:[%s10 + $0x10] sm:$0xff] %vm317, %v1563
  %1572 = vst.msk [vmem:[%s10 + $0x18] sm:$0xff] %vm317, %v1564
  %1573 = vst.msk [vmem:[%s10 + $0x20] sm:$0xff] %vm317, %v1565
  %1574 = vst.msk [vmem:[%s10 + $0x28] sm:$0xff] %vm317, %v1566
  %1575 = vst.msk [vmem:[%s10 + $0x30] sm:$0xff] %vm317, %v1567
  %1576 = vst.msk [vmem:[%s10 + $0x38] sm:$0xff] %vm317, %v1568
  // Predicated region
  $region42: #{tpu_custom_call.1} parent=0 // pred_check
    _
  $region43: #{tpu_custom_call.1} parent=0 // pred_check_branch
    %1578 = sbr.rel (0) target = $region45
  $region44: #{tpu_custom_call.1} parent=0 // pred_region
    _
  $region45: #{tpu_custom_call.1} parent=0 // pred_fallthru
    _
  // Predicated region
  $region46: #{tpu_custom_call.1} parent=0 // pred_check
    _
  $region47: #{tpu_custom_call.1} parent=0 // pred_check_branch
    %1580 = sbr.rel (0) target = $region49
  $region48: #{tpu_custom_call.1} parent=0 // pred_region
    _
  $region49: #{tpu_custom_call.1} parent=0 // pred_fallthru
    _

</llo_original>
